<compile_context>
chip_gen: v6e
topology: v6e:2x2x1
jax: 0.10.0
libtpu: 0.0.40
codegen_flags: <defaults>
</compile_context>

<pallas_src>
import functools

import jax
import jax.numpy as jnp
from jax.experimental import pallas as pl
from jax.experimental.pallas import tpu as pltpu

BN_EPS = 1e-5


# --------------------------- fused Pallas kernel ---------------------------

def _fused_bottleneck_kernel(x_ref, bd1_ref, bcat_ref, bd3_ref,
                             gp_ref, gpt_ref, gc_ref, gct_ref, vmask_ref,
                             o_ref, *, r1, r2, g3, gb, thresh3, inv_count,
                             wp, nh):
    """conv1x1+BN+fire -> conv3x3+BN+fire -> conv1x1+BN(+bypass BN)+fire.

    Layout: every activation is a lane-dense (N*H, W*C) slab kept in
    VMEM/vregs.  gp/gc (and transposes) are 0/1 channel-grouping matrices that
    reduce interleaved (w, c) lanes to per-channel stats and broadcast
    per-channel thresholds back to lanes via tiny single-pass matmuls.
    """
    f32 = jnp.float32
    bf16 = jnp.bfloat16

    def chan_moments(y, g):
        # Per-channel mean / biased var over all N*H*W pixels, one pass.
        # Row-reduce on the XLU, then a tiny (1, W*C)@(W*C, C) f32 matmul
        # (kept f32: the sums need the mantissa; cost is negligible).
        ssum = jnp.dot(jnp.sum(y, axis=0, keepdims=True), g,
                       preferred_element_type=f32)
        ssq = jnp.dot(jnp.sum(y * y, axis=0, keepdims=True), g,
                      preferred_element_type=f32)
        mean = ssum * inv_count
        var = jnp.maximum(ssq * inv_count - mean * mean, 0.0)
        return mean, var

    def bn_fire(y, g, gt, ratio):
        # spike = (gamma*(y-mean)*rsqrt(var+eps) >= thresh)
        #       = (y >= mean + (thresh/gamma)*sqrt(var+eps))     [gamma > 0]
        # Spikes are emitted directly as bf16 (exact 0/1) MXU operands.
        mean, var = chan_moments(y, g)
        thr_chan = mean + ratio * jnp.sqrt(var + BN_EPS)            # (1, C)
        thr_lane = jnp.dot(thr_chan, gt, preferred_element_type=f32)
        return (y >= thr_lane).astype(bf16)

    x = x_ref[...]                                                  # (NH, W*Cin) f32
    gp, gpt = gp_ref[...], gpt_ref[...]
    gc, gct = gc_ref[...], gct_ref[...]
    vm = vmask_ref[...]
    mask_up = vm[:, 0:1]                   # 1.0 where the row has a row above
    mask_dn = vm[:, 1:2]                   # 1.0 where the row has a row below

    # ---- layer 1: 1x1 conv (bf16 block-diag matmul) + BN + fire -----------
    y1 = jnp.dot(x.astype(bf16), bd1_ref[...], preferred_element_type=f32)
    s1 = bn_fire(y1, gp, gpt, r1)                                   # (NH, W*P) bf16

    # ---- layer 2: 3x3 conv, stride 1, pad 1 --------------------------------
    # Horizontal taps + weights for all three vertical offsets folded into
    # ONE bf16 matmul (K = W*P, N = 3*W*P).  Vertical offsets commute with the
    # lane-space matmul, so they are applied afterwards with pltpu.roll
    # (sublane rotate) * per-image boundary-mask columns (realizes the
    # zero padding across both the image top/bottom and the N-image seams).
    y_all = jnp.dot(s1, bcat_ref[...], preferred_element_type=f32)  # (NH, 3*WP)
    p_up = y_all[:, 0 * wp:1 * wp]         # vertical tap dy = -1
    p_mid = y_all[:, 1 * wp:2 * wp]        # vertical tap dy =  0
    p_dn = y_all[:, 2 * wp:3 * wp]         # vertical tap dy = +1
    # out[r] = p[r + dy]  ->  np.roll semantics: shift = -dy (mod NH)
    y2 = (p_mid
          + pltpu.roll(p_up, shift=1, axis=0) * mask_up
          + pltpu.roll(p_dn, shift=nh - 1, axis=0) * mask_dn)
    s2 = bn_fire(y2, gp, gpt, r2)                                   # (NH, W*P) bf16

    # ---- residual layer: 1x1 conv + BN + bypass BN(x) + fire ---------------
    y3 = jnp.dot(s2, bd3_ref[...], preferred_element_type=f32)      # (NH, W*Cout)
    mean_y, var_y = chan_moments(y3, gc)
    mean_b, var_b = chan_moments(x, gc)
    scale_y = g3 * jax.lax.rsqrt(var_y + BN_EPS)                    # (1, Cout)
    scale_b = gb * jax.lax.rsqrt(var_b + BN_EPS)
    # g3*(y3-mu_y)/sd_y + gb*(x-mu_b)/sd_b >= thresh    (divide by scale_y>0)
    #   <=>  y3 + (sb/sy)*x  >=  thresh/sy + mu_y + (sb/sy)*mu_b
    # -> only TWO per-channel lane broadcasts needed.
    ratio_b = scale_b / scale_y                                     # (1, Cout)
    rhs_chan = thresh3 / scale_y + mean_y + ratio_b * mean_b        # (1, Cout)
    rb_lane = jnp.dot(ratio_b, gct, preferred_element_type=f32)     # (1, W*Cout)
    rhs_lane = jnp.dot(rhs_chan, gct, preferred_element_type=f32)
    v = y3 + rb_lane * x
    o_ref[...] = (v >= rhs_lane).astype(o_ref.dtype)


# ------------------- trace-time operand-matrix builders --------------------

def _block_diag(w, reps):
    """kron(eye(reps), w): a 1x1 conv as one matmul in the (rows, reps*C) layout."""
    return jnp.kron(jnp.eye(reps, dtype=w.dtype), w)


def _banded_conv_matrix(w2_row, w_spatial):
    """(W*P, W*P) block-banded matrix for one vertical tap row of a 3x3 conv.

    w2_row: (3, P, P) taps kj = 0, 1, 2 (horizontal offsets dx = kj - 1).
    Output lane (w, cout) accumulates input lane (w + dx, cin) weighted by
    w2_row[kj, cin, cout]; out-of-range w + dx realises the zero padding.
    """
    p = w2_row.shape[1]
    b = jnp.zeros((w_spatial * p, w_spatial * p), w2_row.dtype)
    for kj in range(3):
        dx = kj - 1
        b = b + jnp.kron(jnp.eye(w_spatial, k=-dx, dtype=w2_row.dtype),
                         w2_row[kj])
    return b


def _chan_group_matrix(w_spatial, c, dtype=jnp.float32):
    """(W*C, C) 0/1 matrix summing interleaved (w, c) lanes -> channel c."""
    return jnp.kron(jnp.ones((w_spatial, 1), dtype), jnp.eye(c, dtype=dtype))


# ------------------------------ forward pass -------------------------------

def make_bottleneck_snn_forward(thresh=0.5):
    """Builds the jitted forward.  BN gammas follow SNNLayer.__init__:
    gamma = thresh for layers 1/2 and thresh/sqrt(2) for residual + bypass."""
    gamma1 = gamma2 = float(thresh)
    gamma3 = gamma_byp = float(thresh) / (2.0 ** 0.5)
    assert gamma1 > 0.0 and gamma2 > 0.0    # BN+fire fold divides by gamma
    r1 = float(thresh) / gamma1             # == 1.0 here
    r2 = float(thresh) / gamma2

    @jax.jit
    def forward(x_nchw, params):
        w1, w2, w3 = params["w1"], params["w2"], params["w3"]
        N, Cin, H, W = x_nchw.shape
        P = w1.shape[1]
        Cout = w3.shape[1]
        NH = N * H
        f32, bf16 = jnp.float32, jnp.bfloat16

        # lane-dense layout: rows = N*H image rows, lanes = (w, c) per pixel.
        # x stays f32 (bypass BN / elementwise use it at full precision); it
        # is cast to bf16 only at the MXU operand boundary inside the kernel.
        x2d = jnp.transpose(x_nchw, (0, 2, 3, 1)).reshape(NH, W * Cin)

        # tiny constant operand matrices, built once per trace (~150 KB total)
        bd1 = _block_diag(w1.astype(f32), W).astype(bf16)           # (W*Cin, W*P)
        bd3 = _block_diag(w3.astype(f32), W).astype(bf16)           # (W*P, W*Cout)
        bcat = jnp.concatenate(
            [_banded_conv_matrix(w2[3 * k:3 * k + 3].astype(f32), W)
             for k in range(3)], axis=1).astype(bf16)               # (W*P, 3*W*P)
        gp = _chan_group_matrix(W, P)                               # (W*P, P)
        gc = _chan_group_matrix(W, Cout)                            # (W*Cout, Cout)
        gpt, gct = gp.T, gc.T
        # per-row vertical-boundary masks (a row above / below exists within
        # the same image); precomputed so the kernel needs no iota / modulo.
        hh = jnp.arange(NH, dtype=jnp.int32) % H
        vmask = jnp.stack([hh >= 1, hh <= H - 2], axis=1).astype(f32)  # (NH, 2)

        kernel = functools.partial(
            _fused_bottleneck_kernel,
            r1=r1, r2=r2, g3=gamma3, gb=gamma_byp, thresh3=float(thresh),
            inv_count=1.0 / float(N * H * W), wp=W * P, nh=NH)

        out2d = pl.pallas_call(
            kernel,
            out_shape=jax.ShapeDtypeStruct((NH, W * Cout), bf16),
            in_specs=[pl.BlockSpec(memory_space=pltpu.MemorySpace.VMEM)] * 9,
            out_specs=pl.BlockSpec(memory_space=pltpu.MemorySpace.VMEM),
        )(x2d, bd1, bcat, bd3, gp, gpt, gc, gct, vmask)

        # crop [:, :, 1:-1, 1:-1] in bf16 (spikes are exact 0/1), widen last
        out = out2d.reshape(N, H, W, Cout)[:, 1:-1, 1:-1, :]
        return jnp.transpose(out, (0, 3, 1, 2)).astype(f32)

    return forward


# --------------------------- pure-JAX reference ----------------------------

def bottleneck_snn_reference(x_nchw, params, thresh=0.5):
    """Mirrors the PyTorch module (train-mode BN) without Pallas."""
    w1, w2, w3 = params["w1"], params["w2"], params["w3"]
    N, Cin, H, W = x_nchw.shape
    P = w1.shape[1]
    Cout = w3.shape[1]
    gamma12 = thresh
    gamma3 = gamma_byp = thresh / (2.0 ** 0.5)
    hp = jax.lax.Precision.HIGHEST

    def bn(y, gamma):
        mean = jnp.mean(y, axis=0, keepdims=True)
        var = jnp.mean((y - mean) ** 2, axis=0, keepdims=True)
        return gamma * (y - mean) * jax.lax.rsqrt(var + BN_EPS)

    x2d = jnp.transpose(x_nchw, (0, 2, 3, 1)).reshape(N * H * W, Cin)
    s1 = (bn(jnp.dot(x2d, w1, precision=hp), gamma12) >= thresh).astype(jnp.float32)

    s1p = jnp.pad(s1.reshape(N, H, W, P), ((0, 0), (1, 1), (1, 1), (0, 0)))
    acc = jnp.zeros((N * H * W, P), jnp.float32)
    for ki in range(3):
        for kj in range(3):
            tap = s1p[:, ki:ki + H, kj:kj + W, :].reshape(N * H * W, P)
            acc = acc + jnp.dot(tap, w2[ki * 3 + kj], precision=hp)
    s2 = (bn(acc, gamma12) >= thresh).astype(jnp.float32)

    v = bn(jnp.dot(s2, w3, precision=hp), gamma3) + bn(x2d, gamma_byp)
    s3 = (v >= thresh).astype(jnp.float32)
    out = s3.reshape(N, H, W, Cout)[:, 1:-1, 1:-1, :]
    return jnp.transpose(out, (0, 3, 1, 2))


# ----------------------------------- main -----------------------------------

def make_params(key, inplanes, planes, expansion=4):
    k1, k2, k3 = jax.random.split(key, 3)
    cout = planes * expansion
    assert inplanes == cout, "downsample=None requires inplanes == planes*expansion"
    return dict(
        w1=0.1 * jax.random.normal(k1, (inplanes, planes), jnp.float32),
        # w2[k] with k = ki*3 + kj multiplies the input pixel at spatial offset
        # (ki-1, kj-1); layout [tap, cin, cout]
        w2=0.1 * jax.random.normal(k2, (9, planes, planes), jnp.float32),
        w3=0.1 * jax.random.normal(k3, (planes, cout), jnp.float32),
    )


if __name__ == "__main__":
    # BottleneckSNN(inplanes=16, planes=4, downsample=None, stride2=False, expansion=4)
    N, Cin, H, W = 2, 16, 16, 16
    planes, expansion, thresh = 4, 4, 0.5

    key = jax.random.PRNGKey(0)
    kx, kp = jax.random.split(key)
    x = jax.random.normal(kx, (N, Cin, H, W), jnp.float32)
    params = make_params(kp, Cin, planes, expansion)

    forward = make_bottleneck_snn_forward(thresh)
    out = jax.block_until_ready(forward(x, params))
    assert out.shape == (N, planes * expansion, H - 2, W - 2), out.shape

    # Loose sanity check against a pure-JAX reference.  Spikes may legitimately
    # flip for pixels landing within rounding distance of the BN threshold
    # (bf16 MXU operands + one-pass variance), and such flips cascade through
    # later binarizations, so we only guard against structural errors, which
    # would show up as tens-of-percent mismatch.
    ref = bottleneck_snn_reference(x, params, thresh)
    mismatch = float(jnp.mean(jnp.abs(out - ref)))
    assert mismatch < 0.10, f"spike mismatch fraction vs reference: {mismatch:.4f}"
    print("KERNEL_OK")
</pallas_src>

<mosaic_0001>
module attributes {stable_mosaic.version = 11 : i64} {
  func.func @_fused_bottleneck_kernel(%arg0: memref<32x256xf32, #tpu.memory_space<vmem>>, %arg1: memref<256x64xbf16, #tpu.memory_space<vmem>>, %arg2: memref<64x192xbf16, #tpu.memory_space<vmem>>, %arg3: memref<64x256xbf16, #tpu.memory_space<vmem>>, %arg4: memref<64x4xf32, #tpu.memory_space<vmem>>, %arg5: memref<4x64xf32, #tpu.memory_space<vmem>>, %arg6: memref<256x16xf32, #tpu.memory_space<vmem>>, %arg7: memref<16x256xf32, #tpu.memory_space<vmem>>, %arg8: memref<32x2xf32, #tpu.memory_space<vmem>>, %arg9: memref<32x256xbf16, #tpu.memory_space<vmem>>) attributes {dimension_semantics = [], scalar_prefetch = 0 : i64, scratch_operands = 0 : i64, tpu.core_type = #tpu.core_type<tc>} {
    %c0 = arith.constant 0 : index
    %c0_0 = arith.constant 0 : index
    %0 = vector.load %arg0[%c0, %c0_0] : memref<32x256xf32, #tpu.memory_space<vmem>>, vector<32x256xf32>
    %c0_1 = arith.constant 0 : index
    %c0_2 = arith.constant 0 : index
    %1 = vector.load %arg4[%c0_1, %c0_2] : memref<64x4xf32, #tpu.memory_space<vmem>>, vector<64x4xf32>
    %c0_3 = arith.constant 0 : index
    %c0_4 = arith.constant 0 : index
    %2 = vector.load %arg5[%c0_3, %c0_4] : memref<4x64xf32, #tpu.memory_space<vmem>>, vector<4x64xf32>
    %c0_5 = arith.constant 0 : index
    %c0_6 = arith.constant 0 : index
    %3 = vector.load %arg6[%c0_5, %c0_6] : memref<256x16xf32, #tpu.memory_space<vmem>>, vector<256x16xf32>
    %c0_7 = arith.constant 0 : index
    %c0_8 = arith.constant 0 : index
    %4 = vector.load %arg7[%c0_7, %c0_8] : memref<16x256xf32, #tpu.memory_space<vmem>>, vector<16x256xf32>
    %c0_9 = arith.constant 0 : index
    %c0_10 = arith.constant 0 : index
    %5 = vector.load %arg8[%c0_9, %c0_10] : memref<32x2xf32, #tpu.memory_space<vmem>>, vector<32x2xf32>
    %6 = vector.extract_strided_slice %5 {offsets = [0, 0], sizes = [32, 1], strides = [1, 1]} : vector<32x2xf32> to vector<32x1xf32>
    %7 = vector.extract_strided_slice %5 {offsets = [0, 1], sizes = [32, 1], strides = [1, 1]} : vector<32x2xf32> to vector<32x1xf32>
    %8 = arith.truncf %0 : vector<32x256xf32> to vector<32x256xbf16>
    %c0_11 = arith.constant 0 : index
    %c0_12 = arith.constant 0 : index
    %9 = vector.load %arg1[%c0_11, %c0_12] : memref<256x64xbf16, #tpu.memory_space<vmem>>, vector<256x64xbf16>
    %cst = arith.constant dense<0.000000e+00> : vector<32x64xf32>
    %10 = tpu.matmul %8, %9, %cst {dimension_numbers = #tpu.dot_dimension_numbers<[1], [0], [0], [1], [0, 0, 1, 1], [], []>} : vector<32x256xbf16>, vector<256x64xbf16>, vector<32x64xf32> -> vector<32x64xf32>
    %cst_13 = arith.constant dense<0.000000e+00> : vector<64xf32>
    %11 = vector.multi_reduction <add>, %10, %cst_13 [0] : vector<32x64xf32> to vector<64xf32>
    %12 = vector.shape_cast %11 : vector<64xf32> to vector<1x64xf32>
    %cst_14 = arith.constant dense<0.000000e+00> : vector<1x4xf32>
    %13 = tpu.matmul %12, %1, %cst_14 {dimension_numbers = #tpu.dot_dimension_numbers<[1], [0], [0], [1], [0, 0, 1, 1], [], []>} : vector<1x64xf32>, vector<64x4xf32>, vector<1x4xf32> -> vector<1x4xf32>
    %14 = arith.mulf %10, %10 : vector<32x64xf32>
    %cst_15 = arith.constant dense<0.000000e+00> : vector<64xf32>
    %15 = vector.multi_reduction <add>, %14, %cst_15 [0] : vector<32x64xf32> to vector<64xf32>
    %16 = vector.shape_cast %15 : vector<64xf32> to vector<1x64xf32>
    %cst_16 = arith.constant dense<0.000000e+00> : vector<1x4xf32>
    %17 = tpu.matmul %16, %1, %cst_16 {dimension_numbers = #tpu.dot_dimension_numbers<[1], [0], [0], [1], [0, 0, 1, 1], [], []>} : vector<1x64xf32>, vector<64x4xf32>, vector<1x4xf32> -> vector<1x4xf32>
    %cst_17 = arith.constant 0.001953125 : f32
    %18 = vector.broadcast %cst_17 : f32 to vector<1x4xf32>
    %19 = arith.mulf %13, %18 : vector<1x4xf32>
    %cst_18 = arith.constant 0.001953125 : f32
    %20 = vector.broadcast %cst_18 : f32 to vector<1x4xf32>
    %21 = arith.mulf %17, %20 : vector<1x4xf32>
    %22 = arith.mulf %19, %19 : vector<1x4xf32>
    %23 = arith.subf %21, %22 : vector<1x4xf32>
    %cst_19 = arith.constant 0.000000e+00 : f32
    %24 = vector.broadcast %cst_19 : f32 to vector<1x4xf32>
    %25 = arith.maximumf %23, %24 : vector<1x4xf32>
    %cst_20 = arith.constant 9.99999974E-6 : f32
    %26 = vector.broadcast %cst_20 : f32 to vector<1x4xf32>
    %27 = arith.addf %25, %26 : vector<1x4xf32>
    %28 = math.sqrt %27 : vector<1x4xf32>
    %cst_21 = arith.constant 1.000000e+00 : f32
    %29 = vector.broadcast %cst_21 : f32 to vector<1x4xf32>
    %30 = arith.mulf %29, %28 : vector<1x4xf32>
    %31 = arith.addf %19, %30 : vector<1x4xf32>
    %cst_22 = arith.constant dense<0.000000e+00> : vector<1x64xf32>
    %32 = tpu.matmul %31, %2, %cst_22 {dimension_numbers = #tpu.dot_dimension_numbers<[1], [0], [0], [1], [0, 0, 1, 1], [], []>} : vector<1x4xf32>, vector<4x64xf32>, vector<1x64xf32> -> vector<1x64xf32>
    %33 = vector.broadcast %32 : vector<1x64xf32> to vector<32x64xf32>
    %34 = arith.cmpf oge, %10, %33 : vector<32x64xf32>
    %35 = arith.extui %34 : vector<32x64xi1> to vector<32x64xi32>
    %36 = arith.sitofp %35 : vector<32x64xi32> to vector<32x64xf32>
    %37 = arith.truncf %36 : vector<32x64xf32> to vector<32x64xbf16>
    %c0_23 = arith.constant 0 : index
    %c0_24 = arith.constant 0 : index
    %38 = vector.load %arg2[%c0_23, %c0_24] : memref<64x192xbf16, #tpu.memory_space<vmem>>, vector<64x192xbf16>
    %cst_25 = arith.constant dense<0.000000e+00> : vector<32x192xf32>
    %39 = tpu.matmul %37, %38, %cst_25 {dimension_numbers = #tpu.dot_dimension_numbers<[1], [0], [0], [1], [0, 0, 1, 1], [], []>} : vector<32x64xbf16>, vector<64x192xbf16>, vector<32x192xf32> -> vector<32x192xf32>
    %40 = vector.extract_strided_slice %39 {offsets = [0, 0], sizes = [32, 64], strides = [1, 1]} : vector<32x192xf32> to vector<32x64xf32>
    %41 = vector.extract_strided_slice %39 {offsets = [0, 64], sizes = [32, 64], strides = [1, 1]} : vector<32x192xf32> to vector<32x64xf32>
    %42 = vector.extract_strided_slice %39 {offsets = [0, 128], sizes = [32, 64], strides = [1, 1]} : vector<32x192xf32> to vector<32x64xf32>
    %c1_i32 = arith.constant 1 : i32
    %43 = tpu.dynamic_rotate %40 by %c1_i32 dim 0 : vector<32x64xf32>, i32 -> vector<32x64xf32>
    %44 = vector.broadcast %6 : vector<32x1xf32> to vector<32x64xf32>
    %45 = arith.mulf %43, %44 : vector<32x64xf32>
    %46 = arith.addf %41, %45 : vector<32x64xf32>
    %c31_i32 = arith.constant 31 : i32
    %47 = tpu.dynamic_rotate %42 by %c31_i32 dim 0 : vector<32x64xf32>, i32 -> vector<32x64xf32>
    %48 = vector.broadcast %7 : vector<32x1xf32> to vector<32x64xf32>
    %49 = arith.mulf %47, %48 : vector<32x64xf32>
    %50 = arith.addf %46, %49 : vector<32x64xf32>
    %cst_26 = arith.constant dense<0.000000e+00> : vector<64xf32>
    %51 = vector.multi_reduction <add>, %50, %cst_26 [0] : vector<32x64xf32> to vector<64xf32>
    %52 = vector.shape_cast %51 : vector<64xf32> to vector<1x64xf32>
    %cst_27 = arith.constant dense<0.000000e+00> : vector<1x4xf32>
    %53 = tpu.matmul %52, %1, %cst_27 {dimension_numbers = #tpu.dot_dimension_numbers<[1], [0], [0], [1], [0, 0, 1, 1], [], []>} : vector<1x64xf32>, vector<64x4xf32>, vector<1x4xf32> -> vector<1x4xf32>
    %54 = arith.mulf %50, %50 : vector<32x64xf32>
    %cst_28 = arith.constant dense<0.000000e+00> : vector<64xf32>
    %55 = vector.multi_reduction <add>, %54, %cst_28 [0] : vector<32x64xf32> to vector<64xf32>
    %56 = vector.shape_cast %55 : vector<64xf32> to vector<1x64xf32>
    %cst_29 = arith.constant dense<0.000000e+00> : vector<1x4xf32>
    %57 = tpu.matmul %56, %1, %cst_29 {dimension_numbers = #tpu.dot_dimension_numbers<[1], [0], [0], [1], [0, 0, 1, 1], [], []>} : vector<1x64xf32>, vector<64x4xf32>, vector<1x4xf32> -> vector<1x4xf32>
    %cst_30 = arith.constant 0.001953125 : f32
    %58 = vector.broadcast %cst_30 : f32 to vector<1x4xf32>
    %59 = arith.mulf %53, %58 : vector<1x4xf32>
    %cst_31 = arith.constant 0.001953125 : f32
    %60 = vector.broadcast %cst_31 : f32 to vector<1x4xf32>
    %61 = arith.mulf %57, %60 : vector<1x4xf32>
    %62 = arith.mulf %59, %59 : vector<1x4xf32>
    %63 = arith.subf %61, %62 : vector<1x4xf32>
    %cst_32 = arith.constant 0.000000e+00 : f32
    %64 = vector.broadcast %cst_32 : f32 to vector<1x4xf32>
    %65 = arith.maximumf %63, %64 : vector<1x4xf32>
    %cst_33 = arith.constant 9.99999974E-6 : f32
    %66 = vector.broadcast %cst_33 : f32 to vector<1x4xf32>
    %67 = arith.addf %65, %66 : vector<1x4xf32>
    %68 = math.sqrt %67 : vector<1x4xf32>
    %cst_34 = arith.constant 1.000000e+00 : f32
    %69 = vector.broadcast %cst_34 : f32 to vector<1x4xf32>
    %70 = arith.mulf %69, %68 : vector<1x4xf32>
    %71 = arith.addf %59, %70 : vector<1x4xf32>
    %cst_35 = arith.constant dense<0.000000e+00> : vector<1x64xf32>
    %72 = tpu.matmul %71, %2, %cst_35 {dimension_numbers = #tpu.dot_dimension_numbers<[1], [0], [0], [1], [0, 0, 1, 1], [], []>} : vector<1x4xf32>, vector<4x64xf32>, vector<1x64xf32> -> vector<1x64xf32>
    %73 = vector.broadcast %72 : vector<1x64xf32> to vector<32x64xf32>
    %74 = arith.cmpf oge, %50, %73 : vector<32x64xf32>
    %75 = arith.extui %74 : vector<32x64xi1> to vector<32x64xi32>
    %76 = arith.sitofp %75 : vector<32x64xi32> to vector<32x64xf32>
    %77 = arith.truncf %76 : vector<32x64xf32> to vector<32x64xbf16>
    %c0_36 = arith.constant 0 : index
    %c0_37 = arith.constant 0 : index
    %78 = vector.load %arg3[%c0_36, %c0_37] : memref<64x256xbf16, #tpu.memory_space<vmem>>, vector<64x256xbf16>
    %cst_38 = arith.constant dense<0.000000e+00> : vector<32x256xf32>
    %79 = tpu.matmul %77, %78, %cst_38 {dimension_numbers = #tpu.dot_dimension_numbers<[1], [0], [0], [1], [0, 0, 1, 1], [], []>} : vector<32x64xbf16>, vector<64x256xbf16>, vector<32x256xf32> -> vector<32x256xf32>
    %cst_39 = arith.constant dense<0.000000e+00> : vector<256xf32>
    %80 = vector.multi_reduction <add>, %79, %cst_39 [0] : vector<32x256xf32> to vector<256xf32>
    %81 = vector.shape_cast %80 : vector<256xf32> to vector<1x256xf32>
    %cst_40 = arith.constant dense<0.000000e+00> : vector<1x16xf32>
    %82 = tpu.matmul %81, %3, %cst_40 {dimension_numbers = #tpu.dot_dimension_numbers<[1], [0], [0], [1], [0, 0, 1, 1], [], []>} : vector<1x256xf32>, vector<256x16xf32>, vector<1x16xf32> -> vector<1x16xf32>
    %83 = arith.mulf %79, %79 : vector<32x256xf32>
    %cst_41 = arith.constant dense<0.000000e+00> : vector<256xf32>
    %84 = vector.multi_reduction <add>, %83, %cst_41 [0] : vector<32x256xf32> to vector<256xf32>
    %85 = vector.shape_cast %84 : vector<256xf32> to vector<1x256xf32>
    %cst_42 = arith.constant dense<0.000000e+00> : vector<1x16xf32>
    %86 = tpu.matmul %85, %3, %cst_42 {dimension_numbers = #tpu.dot_dimension_numbers<[1], [0], [0], [1], [0, 0, 1, 1], [], []>} : vector<1x256xf32>, vector<256x16xf32>, vector<1x16xf32> -> vector<1x16xf32>
    %cst_43 = arith.constant 0.001953125 : f32
    %87 = vector.broadcast %cst_43 : f32 to vector<1x16xf32>
    %88 = arith.mulf %82, %87 : vector<1x16xf32>
    %cst_44 = arith.constant 0.001953125 : f32
    %89 = vector.broadcast %cst_44 : f32 to vector<1x16xf32>
    %90 = arith.mulf %86, %89 : vector<1x16xf32>
    %91 = arith.mulf %88, %88 : vector<1x16xf32>
    %92 = arith.subf %90, %91 : vector<1x16xf32>
    %cst_45 = arith.constant 0.000000e+00 : f32
    %93 = vector.broadcast %cst_45 : f32 to vector<1x16xf32>
    %94 = arith.maximumf %92, %93 : vector<1x16xf32>
    %cst_46 = arith.constant dense<0.000000e+00> : vector<256xf32>
    %95 = vector.multi_reduction <add>, %0, %cst_46 [0] : vector<32x256xf32> to vector<256xf32>
    %96 = vector.shape_cast %95 : vector<256xf32> to vector<1x256xf32>
    %cst_47 = arith.constant dense<0.000000e+00> : vector<1x16xf32>
    %97 = tpu.matmul %96, %3, %cst_47 {dimension_numbers = #tpu.dot_dimension_numbers<[1], [0], [0], [1], [0, 0, 1, 1], [], []>} : vector<1x256xf32>, vector<256x16xf32>, vector<1x16xf32> -> vector<1x16xf32>
    %98 = arith.mulf %0, %0 : vector<32x256xf32>
    %cst_48 = arith.constant dense<0.000000e+00> : vector<256xf32>
    %99 = vector.multi_reduction <add>, %98, %cst_48 [0] : vector<32x256xf32> to vector<256xf32>
    %100 = vector.shape_cast %99 : vector<256xf32> to vector<1x256xf32>
    %cst_49 = arith.constant dense<0.000000e+00> : vector<1x16xf32>
    %101 = tpu.matmul %100, %3, %cst_49 {dimension_numbers = #tpu.dot_dimension_numbers<[1], [0], [0], [1], [0, 0, 1, 1], [], []>} : vector<1x256xf32>, vector<256x16xf32>, vector<1x16xf32> -> vector<1x16xf32>
    %cst_50 = arith.constant 0.001953125 : f32
    %102 = vector.broadcast %cst_50 : f32 to vector<1x16xf32>
    %103 = arith.mulf %97, %102 : vector<1x16xf32>
    %cst_51 = arith.constant 0.001953125 : f32
    %104 = vector.broadcast %cst_51 : f32 to vector<1x16xf32>
    %105 = arith.mulf %101, %104 : vector<1x16xf32>
    %106 = arith.mulf %103, %103 : vector<1x16xf32>
    %107 = arith.subf %105, %106 : vector<1x16xf32>
    %cst_52 = arith.constant 0.000000e+00 : f32
    %108 = vector.broadcast %cst_52 : f32 to vector<1x16xf32>
    %109 = arith.maximumf %107, %108 : vector<1x16xf32>
    %cst_53 = arith.constant 9.99999974E-6 : f32
    %110 = vector.broadcast %cst_53 : f32 to vector<1x16xf32>
    %111 = arith.addf %94, %110 : vector<1x16xf32>
    %112 = math.rsqrt %111 : vector<1x16xf32>
    %cst_54 = arith.constant 0.353553385 : f32
    %113 = vector.broadcast %cst_54 : f32 to vector<1x16xf32>
    %114 = arith.mulf %113, %112 : vector<1x16xf32>
    %cst_55 = arith.constant 9.99999974E-6 : f32
    %115 = vector.broadcast %cst_55 : f32 to vector<1x16xf32>
    %116 = arith.addf %109, %115 : vector<1x16xf32>
    %117 = math.rsqrt %116 : vector<1x16xf32>
    %cst_56 = arith.constant 0.353553385 : f32
    %118 = vector.broadcast %cst_56 : f32 to vector<1x16xf32>
    %119 = arith.mulf %118, %117 : vector<1x16xf32>
    %120 = arith.divf %119, %114 : vector<1x16xf32>
    %cst_57 = arith.constant 5.000000e-01 : f32
    %121 = vector.broadcast %cst_57 : f32 to vector<1x16xf32>
    %122 = arith.divf %121, %114 : vector<1x16xf32>
    %123 = arith.addf %122, %88 : vector<1x16xf32>
    %124 = arith.mulf %120, %103 : vector<1x16xf32>
    %125 = arith.addf %123, %124 : vector<1x16xf32>
    %cst_58 = arith.constant dense<0.000000e+00> : vector<1x256xf32>
    %126 = tpu.matmul %120, %4, %cst_58 {dimension_numbers = #tpu.dot_dimension_numbers<[1], [0], [0], [1], [0, 0, 1, 1], [], []>} : vector<1x16xf32>, vector<16x256xf32>, vector<1x256xf32> -> vector<1x256xf32>
    %cst_59 = arith.constant dense<0.000000e+00> : vector<1x256xf32>
    %127 = tpu.matmul %125, %4, %cst_59 {dimension_numbers = #tpu.dot_dimension_numbers<[1], [0], [0], [1], [0, 0, 1, 1], [], []>} : vector<1x16xf32>, vector<16x256xf32>, vector<1x256xf32> -> vector<1x256xf32>
    %128 = vector.broadcast %126 : vector<1x256xf32> to vector<32x256xf32>
    %129 = arith.mulf %128, %0 : vector<32x256xf32>
    %130 = arith.addf %79, %129 : vector<32x256xf32>
    %131 = vector.broadcast %127 : vector<1x256xf32> to vector<32x256xf32>
    %132 = arith.cmpf oge, %130, %131 : vector<32x256xf32>
    %133 = arith.extui %132 : vector<32x256xi1> to vector<32x256xi32>
    %134 = arith.sitofp %133 : vector<32x256xi32> to vector<32x256xf32>
    %135 = arith.truncf %134 : vector<32x256xf32> to vector<32x256xbf16>
    %c0_60 = arith.constant 0 : index
    %c0_61 = arith.constant 0 : index
    %136 = vector.load %arg9[%c0_60, %c0_61] : memref<32x256xbf16, #tpu.memory_space<vmem>>, vector<32x256xbf16>
    tpu.vector_store %arg9[%c0_60, %c0_61], %135 {strides = array<i32>} : memref<32x256xbf16, #tpu.memory_space<vmem>>, vector<32x256xbf16>,
    return
  }
}

</mosaic_0001>

<llo_original>
// kernel: forward.1
$region0: #{forward.1}
  #allocation0 [shape = 'u32[]', space=smem, size = 0x4, offset = 0x4, fixed_abs, tag = 'smem constant byte address 0x4 - core index']
  #allocation1 [shape = 'u32[144,128]{1,0:T(1,128)}', space=vmem, size = 0x12000, scoped, tag = 'internal scratch']
  %s0 = inlined_call_operand.vmem [shape: f32[32,256], index: 0, kind: input, shape index: {}]
  %s1 = inlined_call_operand.vmem [shape: bf16[256,64], index: 1, kind: input, shape index: {}]
  %s2 = inlined_call_operand.vmem [shape: bf16[64,192], index: 2, kind: input, shape index: {}]
  %s3 = inlined_call_operand.vmem [shape: bf16[64,256], index: 3, kind: input, shape index: {}]
  %s4 = inlined_call_operand.vmem [shape: f32[64,4], index: 4, kind: input, shape index: {}]
  %s5 = inlined_call_operand.vmem [shape: f32[4,64], index: 5, kind: input, shape index: {}]
  %s6 = inlined_call_operand.vmem [shape: f32[256,16], index: 6, kind: input, shape index: {}]
  %s7 = inlined_call_operand.vmem [shape: f32[16,256], index: 7, kind: input, shape index: {}]
  %s8 = inlined_call_operand.vmem [shape: f32[32,2], index: 8, kind: input, shape index: {}]
  %s9 = inlined_call_operand.vmem [shape: bf16[32,256], index: 9, kind: output, shape index: {}]
  %s10 = sld [smem:[#allocation0]]
  $region46: #{forward.1} parent=0
    _
  %s12 = ssub.s32 1, %s10
  %s13 = scalar_select 0, %s12, %s10
  // Predicated region
  $region2: #{forward.1} parent=0 // pred_check
    _
  $region3: #{forward.1} parent=0 // pred_check_branch
    %15 = sbr.rel (0) target = $region5
  $region4: #{forward.1} parent=0 // pred_region
    _
  $region5: #{forward.1} parent=0 // pred_fallthru
    _
  // Predicated region
  $region6: #{forward.1} parent=0 // pred_check
    _
  $region7: #{forward.1} parent=0 // pred_check_branch
    %17 = sbr.rel (0) target = $region9
  $region8: #{forward.1} parent=0 // pred_region
    _
  $region9: #{forward.1} parent=0 // pred_fallthru
    _
  // Predicated region
  $region10: #{forward.1} parent=0 // pred_check
    _
  $region11: #{forward.1} parent=0 // pred_check_branch
    %19 = sbr.rel (0) target = $region13
  $region12: #{forward.1} parent=0 // pred_region
    _
  $region13: #{forward.1} parent=0 // pred_fallthru
    _
  // Predicated region
  $region14: #{forward.1} parent=0 // pred_check
    _
  $region15: #{forward.1} parent=0 // pred_check_branch
    %21 = sbr.rel (0) target = $region17
  $region16: #{forward.1} parent=0 // pred_region
    _
  $region17: #{forward.1} parent=0 // pred_fallthru
    _
  // Predicated region
  $region18: #{forward.1} parent=0 // pred_check
    _
  $region19: #{forward.1} parent=0 // pred_check_branch
    %23 = sbr.rel (0) target = $region21
  $region20: #{forward.1} parent=0 // pred_region
    _
  $region21: #{forward.1} parent=0 // pred_fallthru
    _
  // Predicated region
  $region22: #{forward.1} parent=0 // pred_check
    _
  $region23: #{forward.1} parent=0 // pred_check_branch
    %25 = sbr.rel (0) target = $region25
  $region24: #{forward.1} parent=0 // pred_region
    _
  $region25: #{forward.1} parent=0 // pred_fallthru
    _
  // Predicated region
  $region26: #{forward.1} parent=0 // pred_check
    _
  $region27: #{forward.1} parent=0 // pred_check_branch
    %27 = sbr.rel (0) target = $region29
  $region28: #{forward.1} parent=0 // pred_region
    _
  $region29: #{forward.1} parent=0 // pred_fallthru
    _
  // Predicated region
  $region30: #{forward.1} parent=0 // pred_check
    _
  $region31: #{forward.1} parent=0 // pred_check_branch
    %29 = sbr.rel (0) target = $region33
  $region32: #{forward.1} parent=0 // pred_region
    _
  $region33: #{forward.1} parent=0 // pred_fallthru
    _
  // Predicated region
  $region34: #{forward.1} parent=0 // pred_check
    _
  $region35: #{forward.1} parent=0 // pred_check_branch
    %31 = sbr.rel (0) target = $region37
  $region36: #{forward.1} parent=0 // pred_region
    _
  $region37: #{forward.1} parent=0 // pred_fallthru
    _
  %v33 = vld [vmem:[%s0] sm:$0xff]
  %v34 = vld [vmem:[%s0 + $0x8] sm:$0xff]
  %v35 = vld [vmem:[%s0 + $0x10] sm:$0xff]
  %v36 = vld [vmem:[%s0 + $0x18] sm:$0xff]
  %v37 = vld [vmem:[%s0 + $0x20] sm:$0xff]
  %v38 = vld [vmem:[%s0 + $0x28] sm:$0xff]
  %v39 = vld [vmem:[%s0 + $0x30] sm:$0xff]
  %v40 = vld [vmem:[%s0 + $0x38] sm:$0xff]
  %v41 = vld [vmem:[%s4] sm:$0xff]
  %v42 = vld [vmem:[%s4 + $0x8] sm:$0xff]
  %v43 = vld [vmem:[%s4 + $0x10] sm:$0xff]
  %v44 = vld [vmem:[%s4 + $0x18] sm:$0xff]
  %v45 = vld [vmem:[%s4 + $0x20] sm:$0xff]
  %v46 = vld [vmem:[%s4 + $0x28] sm:$0xff]
  %v47 = vld [vmem:[%s4 + $0x30] sm:$0xff]
  %v48 = vld [vmem:[%s4 + $0x38] sm:$0xff]
  %v49 = vld [vmem:[%s5] sm:$0xf]
  %v50 = vld [vmem:[%s6] sm:$0xff]
  %v51 = vld [vmem:[%s6 + $0x8] sm:$0xff]
  %v52 = vld [vmem:[%s6 + $0x10] sm:$0xff]
  %v53 = vld [vmem:[%s6 + $0x18] sm:$0xff]
  %v54 = vld [vmem:[%s6 + $0x20] sm:$0xff]
  %v55 = vld [vmem:[%s6 + $0x28] sm:$0xff]
  %v56 = vld [vmem:[%s6 + $0x30] sm:$0xff]
  %v57 = vld [vmem:[%s6 + $0x38] sm:$0xff]
  %v58 = vld [vmem:[%s6 + $0x40] sm:$0xff]
  %v59 = vld [vmem:[%s6 + $0x48] sm:$0xff]
  %v60 = vld [vmem:[%s6 + $0x50] sm:$0xff]
  %v61 = vld [vmem:[%s6 + $0x58] sm:$0xff]
  %v62 = vld [vmem:[%s6 + $0x60] sm:$0xff]
  %v63 = vld [vmem:[%s6 + $0x68] sm:$0xff]
  %v64 = vld [vmem:[%s6 + $0x70] sm:$0xff]
  %v65 = vld [vmem:[%s6 + $0x78] sm:$0xff]
  %v66 = vld [vmem:[%s6 + $0x80] sm:$0xff]
  %v67 = vld [vmem:[%s6 + $0x88] sm:$0xff]
  %v68 = vld [vmem:[%s6 + $0x90] sm:$0xff]
  %v69 = vld [vmem:[%s6 + $0x98] sm:$0xff]
  %v70 = vld [vmem:[%s6 + $0xa0] sm:$0xff]
  %v71 = vld [vmem:[%s6 + $0xa8] sm:$0xff]
  %v72 = vld [vmem:[%s6 + $0xb0] sm:$0xff]
  %v73 = vld [vmem:[%s6 + $0xb8] sm:$0xff]
  %v74 = vld [vmem:[%s6 + $0xc0] sm:$0xff]
  %v75 = vld [vmem:[%s6 + $0xc8] sm:$0xff]
  %v76 = vld [vmem:[%s6 + $0xd0] sm:$0xff]
  %v77 = vld [vmem:[%s6 + $0xd8] sm:$0xff]
  %v78 = vld [vmem:[%s6 + $0xe0] sm:$0xff]
  %v79 = vld [vmem:[%s6 + $0xe8] sm:$0xff]
  %v80 = vld [vmem:[%s6 + $0xf0] sm:$0xff]
  %v81 = vld [vmem:[%s6 + $0xf8] sm:$0xff]
  %v82 = vld [vmem:[%s7] sm:$0xff]
  %v83 = vld [vmem:[%s7 + $0x8] sm:$0xff]
  %v84 = vld [vmem:[%s7 + $0x10] sm:$0xff]
  %v85 = vld [vmem:[%s7 + $0x18] sm:$0xff]
  %v86 = vld [vmem:[%s8] sm:$0xff]
  %v87 = vld [vmem:[%s8 + $0x8] sm:$0xff]
  %v88 = vld [vmem:[%s8 + $0x10] sm:$0xff]
  %v89 = vld [vmem:[%s8 + $0x18] sm:$0xff]
  %v90 = vpack.c.bf16 %v35, %v33
  %v91 = vpack.c.bf16 %v36, %v34
  %v92 = vpack.c.bf16 %v39, %v37
  %v93 = vpack.c.bf16 %v40, %v38
  %v94 = vld [vmem:[%s1] sm:$0xf]
  %v95 = vld [vmem:[%s1 + $0x4] sm:$0xf]
  %v96 = vld [vmem:[%s1 + $0x8] sm:$0xf]
  %v97 = vld [vmem:[%s1 + $0xc] sm:$0xf]
  %v98 = vld [vmem:[%s1 + $0x10] sm:$0xf]
  %v99 = vld [vmem:[%s1 + $0x14] sm:$0xf]
  %v100 = vld [vmem:[%s1 + $0x18] sm:$0xf]
  %v101 = vld [vmem:[%s1 + $0x1c] sm:$0xf]
  %v102 = vld [vmem:[%s1 + $0x20] sm:$0xf]
  %v103 = vld [vmem:[%s1 + $0x24] sm:$0xf]
  %v104 = vld [vmem:[%s1 + $0x28] sm:$0xf]
  %v105 = vld [vmem:[%s1 + $0x2c] sm:$0xf]
  %v106 = vld [vmem:[%s1 + $0x30] sm:$0xf]
  %v107 = vld [vmem:[%s1 + $0x34] sm:$0xf]
  %v108 = vld [vmem:[%s1 + $0x38] sm:$0xf]
  %v109 = vld [vmem:[%s1 + $0x3c] sm:$0xf]
  %v110 = vld [vmem:[%s1 + $0x40] sm:$0xf]
  %v111 = vld [vmem:[%s1 + $0x44] sm:$0xf]
  %v112 = vld [vmem:[%s1 + $0x48] sm:$0xf]
  %v113 = vld [vmem:[%s1 + $0x4c] sm:$0xf]
  %v114 = vld [vmem:[%s1 + $0x50] sm:$0xf]
  %v115 = vld [vmem:[%s1 + $0x54] sm:$0xf]
  %v116 = vld [vmem:[%s1 + $0x58] sm:$0xf]
  %v117 = vld [vmem:[%s1 + $0x5c] sm:$0xf]
  %v118 = vld [vmem:[%s1 + $0x60] sm:$0xf]
  %v119 = vld [vmem:[%s1 + $0x64] sm:$0xf]
  %v120 = vld [vmem:[%s1 + $0x68] sm:$0xf]
  %v121 = vld [vmem:[%s1 + $0x6c] sm:$0xf]
  %v122 = vld [vmem:[%s1 + $0x70] sm:$0xf]
  %v123 = vld [vmem:[%s1 + $0x74] sm:$0xf]
  %v124 = vld [vmem:[%s1 + $0x78] sm:$0xf]
  %v125 = vld [vmem:[%s1 + $0x7c] sm:$0xf]
  %v158 = vunpack.c.l.b16 %v94
  %v159 = vunpack.c.l.b16 %v95
  %v160 = vunpack.c.l.b16 %v96
  %v161 = vunpack.c.l.b16 %v97
  %v162 = vunpack.c.l.b16 %v98
  %v163 = vunpack.c.l.b16 %v99
  %v164 = vunpack.c.l.b16 %v100
  %v165 = vunpack.c.l.b16 %v101
  %v166 = vunpack.c.l.b16 %v102
  %v167 = vunpack.c.l.b16 %v103
  %v168 = vunpack.c.l.b16 %v104
  %v169 = vunpack.c.l.b16 %v105
  %v170 = vunpack.c.l.b16 %v106
  %v171 = vunpack.c.l.b16 %v107
  %v172 = vunpack.c.l.b16 %v108
  %v173 = vunpack.c.l.b16 %v109
  %v174 = vunpack.c.l.b16 %v110
  %v175 = vunpack.c.l.b16 %v111
  %v176 = vunpack.c.l.b16 %v112
  %v177 = vunpack.c.l.b16 %v113
  %v178 = vunpack.c.l.b16 %v114
  %v179 = vunpack.c.l.b16 %v115
  %v180 = vunpack.c.l.b16 %v116
  %v181 = vunpack.c.l.b16 %v117
  %v182 = vunpack.c.l.b16 %v118
  %v183 = vunpack.c.l.b16 %v119
  %v184 = vunpack.c.l.b16 %v120
  %v185 = vunpack.c.l.b16 %v121
  %v186 = vunpack.c.l.b16 %v122
  %v187 = vunpack.c.l.b16 %v123
  %v188 = vunpack.c.l.b16 %v124
  %v189 = vunpack.c.l.b16 %v125
  %v190 = vpack.c.b16 %v159, %v158
  %v191 = vpack.c.b16 %v161, %v160
  %v192 = vpack.c.b16 %v163, %v162
  %v193 = vpack.c.b16 %v165, %v164
  %v194 = vpack.c.b16 %v167, %v166
  %v195 = vpack.c.b16 %v169, %v168
  %v196 = vpack.c.b16 %v171, %v170
  %v197 = vpack.c.b16 %v173, %v172
  %v198 = vpack.c.b16 %v175, %v174
  %v199 = vpack.c.b16 %v177, %v176
  %v200 = vpack.c.b16 %v179, %v178
  %v201 = vpack.c.b16 %v181, %v180
  %v202 = vpack.c.b16 %v183, %v182
  %v203 = vpack.c.b16 %v185, %v184
  %v204 = vpack.c.b16 %v187, %v186
  %v205 = vpack.c.b16 %v189, %v188
  %222 = vmatprep.subr.bf16.mxu0 0
  %223 = vmatpush1.bf16.msra.mxu0 %v197
  %224 = vmatprep.subr.bf16.mxu0 0
  %225 = vmatpush1.bf16.msra.mxu0 %v196
  %226 = vmatprep.subr.bf16.mxu0 0
  %227 = vmatpush1.bf16.msra.mxu0 %v195
  %228 = vmatprep.subr.bf16.mxu0 0
  %229 = vmatpush1.bf16.msra.mxu0 %v194
  %230 = vmatprep.subr.bf16.mxu0 0
  %231 = vmatpush1.bf16.msra.mxu0 %v193
  %232 = vmatprep.subr.bf16.mxu0 0
  %233 = vmatpush1.bf16.msra.mxu0 %v192
  %234 = vmatprep.subr.bf16.mxu0 0
  %235 = vmatpush1.bf16.msra.mxu0 %v191
  %236 = vmatprep.subr.bf16.mxu0 0
  %237 = vmatpush1.bf16.msra.mxu0 %v190
  %238 = vmatprep.subr.bf16.mxu0 0
  %239 = vmatpush2.bf16.msra.mxu0 %v205
  %240 = vmatprep.subr.bf16.mxu0 0
  %241 = vmatpush2.bf16.msra.mxu0 %v204
  %242 = vmatprep.subr.bf16.mxu0 0
  %243 = vmatpush2.bf16.msra.mxu0 %v203
  %244 = vmatprep.subr.bf16.mxu0 0
  %245 = vmatpush2.bf16.msra.mxu0 %v202
  %246 = vmatprep.subr.bf16.mxu0 0
  %247 = vmatpush2.bf16.msra.mxu0 %v201
  %248 = vmatprep.subr.bf16.mxu0 0
  %249 = vmatpush2.bf16.msra.mxu0 %v200
  %250 = vmatprep.subr.bf16.mxu0 0
  %251 = vmatpush2.bf16.msra.mxu0 %v199
  %252 = vmatprep.subr.bf16.mxu0 0
  %253 = vmatpush2.bf16.msra.mxu0 %v198
  %254 = vmatprep.mubr.bf16.mxu0 %v91
  %255 = vmatmul.mubr.bf16.gmra.mxu0 %v90
  %v256 = vpop.f32.mrf.mxu0
  %v257 = vadd.f32 0.0, %v256
  %v258 = vpop.f32.mrf.mxu0
  %v259 = vpop.f32.mrf.mxu0
  %v260 = vadd.f32 0.0, %v259
  %v261 = vpop.f32.mrf.mxu0
  %262 = vmatprep.mubr.bf16.mxu0 %v93
  %263 = vmatmul.mubr.bf16.gmra.mxu0 %v92
  %v264 = vpop.f32.mrf.mxu0
  %v265 = vadd.f32 0.0, %v264
  %v266 = vpop.f32.mrf.mxu0
  %v267 = vpop.f32.mrf.mxu0
  %v268 = vadd.f32 0.0, %v267
  %v269 = vpop.f32.mrf.mxu0
  %270 = vdwg.mxu0
  %vm271 = vcmask 523264
  %v272 = vsel %vm271, %v257, 0.0
  %v273 = vsel %vm271, %v260, 0.0
  %v274 = vadd.f32 %v272, %v273
  %v275 = vsel %vm271, %v265, 0.0
  %v276 = vadd.f32 %v274, %v275
  %v277 = vsel %vm271, %v268, 0.0
  %v278 = vadd.f32 %v276, %v277
  %v279 = vrot.slane %v278, 4
  %v280 = vadd.f32 %v278, %v279
  %v281 = vrot.slane %v280, 2
  %v282 = vadd.f32 %v280, %v281
  %v283 = vrot.slane %v282, 1
  %v284 = vadd.f32 %v282, %v283
  %v286 = vsel %vm271, %v284, 0
  %288 = vmatprep.subr.mxu0 0.0
  %289 = vmatpush1.msra.mxu0 0.0
  %290 = vmatprep.subr.mxu0 0.0
  %291 = vmatpush1.msra.mxu0 0.0
  %292 = vmatprep.subr.mxu0 0.0
  %293 = vmatpush1.msra.mxu0 0.0
  %294 = vmatprep.subr.mxu0 0.0
  %295 = vmatpush1.msra.mxu0 0.0
  %296 = vmatprep.subr.mxu0 0.0
  %297 = vmatpush1.msra.mxu0 0.0
  %298 = vmatprep.subr.mxu0 0.0
  %299 = vmatpush1.msra.mxu0 0.0
  %300 = vmatprep.subr.mxu0 0.0
  %301 = vmatpush1.msra.mxu0 0.0
  %302 = vmatprep.subr.mxu0 0.0
  %303 = vmatpush1.msra.mxu0 0.0
  %304 = vmatprep.subr.mxu0 0.0
  %305 = vmatpush1.msra.mxu0 %v48
  %306 = vmatprep.subr.mxu0 0.0
  %307 = vmatpush1.msra.mxu0 %v47
  %308 = vmatprep.subr.mxu0 0.0
  %309 = vmatpush1.msra.mxu0 %v46
  %310 = vmatprep.subr.mxu0 0.0
  %311 = vmatpush1.msra.mxu0 %v45
  %312 = vmatprep.subr.mxu0 0.0
  %313 = vmatpush1.msra.mxu0 %v44
  %314 = vmatprep.subr.mxu0 0.0
  %315 = vmatpush1.msra.mxu0 %v43
  %316 = vmatprep.subr.mxu0 0.0
  %317 = vmatpush1.msra.mxu0 %v42
  %318 = vmatprep.subr.mxu0 0.0
  %319 = vmatpush1.msra.mxu0 %v41
  %320 = vmatprep.subr.mxu0 0.0
  %321 = vmatpush2.msra.mxu0 0.0
  %322 = vmatprep.subr.mxu0 0.0
  %323 = vmatpush2.msra.mxu0 0.0
  %324 = vmatprep.subr.mxu0 0.0
  %325 = vmatpush2.msra.mxu0 0.0
  %326 = vmatprep.subr.mxu0 0.0
  %327 = vmatpush2.msra.mxu0 0.0
  %328 = vmatprep.subr.mxu0 0.0
  %329 = vmatpush2.msra.mxu0 0.0
  %330 = vmatprep.subr.mxu0 0.0
  %331 = vmatpush2.msra.mxu0 0.0
  %332 = vmatprep.subr.mxu0 0.0
  %333 = vmatpush2.msra.mxu0 0.0
  %334 = vmatprep.subr.mxu0 0.0
  %335 = vmatpush2.msra.mxu0 0.0
  %336 = vmatprep.subr.mxu0 0.0
  %337 = vmatpush2.msra.mxu0 0.0
  %338 = vmatprep.subr.mxu0 0.0
  %339 = vmatpush2.msra.mxu0 0.0
  %340 = vmatprep.subr.mxu0 0.0
  %341 = vmatpush2.msra.mxu0 0.0
  %342 = vmatprep.subr.mxu0 0.0
  %343 = vmatpush2.msra.mxu0 0.0
  %344 = vmatprep.subr.mxu0 0.0
  %345 = vmatpush2.msra.mxu0 0.0
  %346 = vmatprep.subr.mxu0 0.0
  %347 = vmatpush2.msra.mxu0 0.0
  %348 = vmatprep.subr.mxu0 0.0
  %349 = vmatpush2.msra.mxu0 0.0
  %350 = vmatprep.subr.mxu0 0.0
  %351 = vmatpush2.msra.mxu0 0.0
  %352 = vmatprep.mubr.f32.mxu0 0.0
  %353 = vmatmul.mubr.f32.gmra.mxu0 %v286
  %v354 = vpop.f32.mrf.mxu0
  %v355 = vadd.f32 0.0, %v354
  %v356 = vpop.f32.mrf.mxu0
  %357 = vdwg.mxu0
  %v358 = vmul.f32 %v257, %v257
  %v359 = vmul.f32 %v260, %v260
  %v360 = vmul.f32 %v265, %v265
  %v361 = vmul.f32 %v268, %v268
  %v362 = vsel %vm271, %v358, 0.0
  %v363 = vsel %vm271, %v359, 0.0
  %v364 = vadd.f32 %v362, %v363
  %v365 = vsel %vm271, %v360, 0.0
  %v366 = vadd.f32 %v364, %v365
  %v367 = vsel %vm271, %v361, 0.0
  %v368 = vadd.f32 %v366, %v367
  %v369 = vrot.slane %v368, 4
  %v370 = vadd.f32 %v368, %v369
  %v371 = vrot.slane %v370, 2
  %v372 = vadd.f32 %v370, %v371
  %v373 = vrot.slane %v372, 1
  %v374 = vadd.f32 %v372, %v373
  %v376 = vsel %vm271, %v374, 0
  %378 = vmatprep.subr.mxu0 0.0
  %379 = vmatpush1.msra.mxu0 0.0
  %380 = vmatprep.subr.mxu0 0.0
  %381 = vmatpush1.msra.mxu0 0.0
  %382 = vmatprep.subr.mxu0 0.0
  %383 = vmatpush1.msra.mxu0 0.0
  %384 = vmatprep.subr.mxu0 0.0
  %385 = vmatpush1.msra.mxu0 0.0
  %386 = vmatprep.subr.mxu0 0.0
  %387 = vmatpush1.msra.mxu0 0.0
  %388 = vmatprep.subr.mxu0 0.0
  %389 = vmatpush1.msra.mxu0 0.0
  %390 = vmatprep.subr.mxu0 0.0
  %391 = vmatpush1.msra.mxu0 0.0
  %392 = vmatprep.subr.mxu0 0.0
  %393 = vmatpush1.msra.mxu0 0.0
  %394 = vmatprep.subr.mxu0 0.0
  %395 = vmatpush1.msra.mxu0 %v48
  %396 = vmatprep.subr.mxu0 0.0
  %397 = vmatpush1.msra.mxu0 %v47
  %398 = vmatprep.subr.mxu0 0.0
  %399 = vmatpush1.msra.mxu0 %v46
  %400 = vmatprep.subr.mxu0 0.0
  %401 = vmatpush1.msra.mxu0 %v45
  %402 = vmatprep.subr.mxu0 0.0
  %403 = vmatpush1.msra.mxu0 %v44
  %404 = vmatprep.subr.mxu0 0.0
  %405 = vmatpush1.msra.mxu0 %v43
  %406 = vmatprep.subr.mxu0 0.0
  %407 = vmatpush1.msra.mxu0 %v42
  %408 = vmatprep.subr.mxu0 0.0
  %409 = vmatpush1.msra.mxu0 %v41
  %410 = vmatprep.subr.mxu0 0.0
  %411 = vmatpush2.msra.mxu0 0.0
  %412 = vmatprep.subr.mxu0 0.0
  %413 = vmatpush2.msra.mxu0 0.0
  %414 = vmatprep.subr.mxu0 0.0
  %415 = vmatpush2.msra.mxu0 0.0
  %416 = vmatprep.subr.mxu0 0.0
  %417 = vmatpush2.msra.mxu0 0.0
  %418 = vmatprep.subr.mxu0 0.0
  %419 = vmatpush2.msra.mxu0 0.0
  %420 = vmatprep.subr.mxu0 0.0
  %421 = vmatpush2.msra.mxu0 0.0
  %422 = vmatprep.subr.mxu0 0.0
  %423 = vmatpush2.msra.mxu0 0.0
  %424 = vmatprep.subr.mxu0 0.0
  %425 = vmatpush2.msra.mxu0 0.0
  %426 = vmatprep.subr.mxu0 0.0
  %427 = vmatpush2.msra.mxu0 0.0
  %428 = vmatprep.subr.mxu0 0.0
  %429 = vmatpush2.msra.mxu0 0.0
  %430 = vmatprep.subr.mxu0 0.0
  %431 = vmatpush2.msra.mxu0 0.0
  %432 = vmatprep.subr.mxu0 0.0
  %433 = vmatpush2.msra.mxu0 0.0
  %434 = vmatprep.subr.mxu0 0.0
  %435 = vmatpush2.msra.mxu0 0.0
  %436 = vmatprep.subr.mxu0 0.0
  %437 = vmatpush2.msra.mxu0 0.0
  %438 = vmatprep.subr.mxu0 0.0
  %439 = vmatpush2.msra.mxu0 0.0
  %440 = vmatprep.subr.mxu0 0.0
  %441 = vmatpush2.msra.mxu0 0.0
  %442 = vmatprep.mubr.f32.mxu0 0.0
  %443 = vmatmul.mubr.f32.gmra.mxu0 %v376
  %v444 = vpop.f32.mrf.mxu0
  %v445 = vadd.f32 0.0, %v444
  %v446 = vpop.f32.mrf.mxu0
  %447 = vdwg.mxu0
  %v448 = vmul.f32 %v355, 0.001953125
  %v449 = vmul.f32 %v445, 0.001953125
  %v450 = vmul.f32 %v448, %v448
  %v451 = vsub.f32 %v449, %v450
  %v452 = vmax.f32 %v451, 0.0
  %v453 = vadd.f32 %v452, 1e-05
  %v454 = vrsqrt.pop %v453
  %v455 = vmul.f32 %v453, %v454
  %vm456 = vcmp.eq.f32.partialorder %v453, inf
  %v457 = vsel %vm456, %v453, %v455
  %vm458 = vcmp.eq.f32.partialorder %v453, 0.0
  %v459 = vand.u32 %v453, 2147483648
  %v460 = vsel %vm458, %v459, %v457
  %v461 = vadd.f32 %v448, %v460
  %vm462 = vcmask 31744
  %v464 = vsel %vm462, %v461, 0
  %vm466 = vcmask 1043456
  %v468 = vsel %vm466, %v49, 0
  %470 = vmatprep.subr.mxu0 0.0
  %471 = vmatpush1.msra.mxu0 0.0
  %472 = vmatprep.subr.mxu0 0.0
  %473 = vmatpush1.msra.mxu0 0.0
  %474 = vmatprep.subr.mxu0 0.0
  %475 = vmatpush1.msra.mxu0 0.0
  %476 = vmatprep.subr.mxu0 0.0
  %477 = vmatpush1.msra.mxu0 0.0
  %478 = vmatprep.subr.mxu0 0.0
  %479 = vmatpush1.msra.mxu0 0.0
  %480 = vmatprep.subr.mxu0 0.0
  %481 = vmatpush1.msra.mxu0 0.0
  %482 = vmatprep.subr.mxu0 0.0
  %483 = vmatpush1.msra.mxu0 0.0
  %484 = vmatprep.subr.mxu0 0.0
  %485 = vmatpush1.msra.mxu0 0.0
  %486 = vmatprep.subr.mxu0 0.0
  %487 = vmatpush1.msra.mxu0 0.0
  %488 = vmatprep.subr.mxu0 0.0
  %489 = vmatpush1.msra.mxu0 0.0
  %490 = vmatprep.subr.mxu0 0.0
  %491 = vmatpush1.msra.mxu0 0.0
  %492 = vmatprep.subr.mxu0 0.0
  %493 = vmatpush1.msra.mxu0 0.0
  %494 = vmatprep.subr.mxu0 0.0
  %495 = vmatpush1.msra.mxu0 0.0
  %496 = vmatprep.subr.mxu0 0.0
  %497 = vmatpush1.msra.mxu0 0.0
  %498 = vmatprep.subr.mxu0 0.0
  %499 = vmatpush1.msra.mxu0 0.0
  %500 = vmatprep.subr.mxu0 0.0
  %501 = vmatpush1.msra.mxu0 %v468
  %502 = vmatprep.subr.mxu0 0.0
  %503 = vmatpush2.msra.mxu0 0.0
  %504 = vmatprep.subr.mxu0 0.0
  %505 = vmatpush2.msra.mxu0 0.0
  %506 = vmatprep.subr.mxu0 0.0
  %507 = vmatpush2.msra.mxu0 0.0
  %508 = vmatprep.subr.mxu0 0.0
  %509 = vmatpush2.msra.mxu0 0.0
  %510 = vmatprep.subr.mxu0 0.0
  %511 = vmatpush2.msra.mxu0 0.0
  %512 = vmatprep.subr.mxu0 0.0
  %513 = vmatpush2.msra.mxu0 0.0
  %514 = vmatprep.subr.mxu0 0.0
  %515 = vmatpush2.msra.mxu0 0.0
  %516 = vmatprep.subr.mxu0 0.0
  %517 = vmatpush2.msra.mxu0 0.0
  %518 = vmatprep.subr.mxu0 0.0
  %519 = vmatpush2.msra.mxu0 0.0
  %520 = vmatprep.subr.mxu0 0.0
  %521 = vmatpush2.msra.mxu0 0.0
  %522 = vmatprep.subr.mxu0 0.0
  %523 = vmatpush2.msra.mxu0 0.0
  %524 = vmatprep.subr.mxu0 0.0
  %525 = vmatpush2.msra.mxu0 0.0
  %526 = vmatprep.subr.mxu0 0.0
  %527 = vmatpush2.msra.mxu0 0.0
  %528 = vmatprep.subr.mxu0 0.0
  %529 = vmatpush2.msra.mxu0 0.0
  %530 = vmatprep.subr.mxu0 0.0
  %531 = vmatpush2.msra.mxu0 0.0
  %532 = vmatprep.subr.mxu0 0.0
  %533 = vmatpush2.msra.mxu0 0.0
  %534 = vmatprep.mubr.f32.mxu0 0.0
  %535 = vmatmul.mubr.f32.gmra.mxu0 %v464
  %v536 = vpop.f32.mrf.mxu0
  %v537 = vadd.f32 0.0, %v536
  %v538 = vpop.f32.mrf.mxu0
  %539 = vdwg.mxu0
  %v540 = vlaneseq
  %v541 = vshrl.u32 %v540, 7
  %v542 = vsub.s32 0, %v541
  %v543 = vrot.slane %v537, %v542
  %vm544 = vcmp.ge.f32.partialorder %v257, %v543
  %vm545 = vcmp.ge.f32.partialorder %v260, %v543
  %vm546 = vcmp.ge.f32.partialorder %v265, %v543
  %vm547 = vcmp.ge.f32.partialorder %v268, %v543
  %v548 = vsel %vm544, 1, 0
  %v549 = vsel %vm545, 1, 0
  %v550 = vsel %vm546, 1, 0
  %v551 = vsel %vm547, 1, 0
  %v552 = vcvt.s32.f32 %v548
  %v553 = vcvt.s32.f32 %v549
  %v554 = vcvt.s32.f32 %v550
  %v555 = vcvt.s32.f32 %v551
  %v556 = vpack.c.bf16 %v553, %v552
  %v557 = vpack.c.bf16 %v555, %v554
  %v558 = vld [vmem:[%s2] sm:$0xff]
  %v559 = vld [vmem:[%s2 + $0x8] sm:$0xff]
  %v560 = vld [vmem:[%s2 + $0x10] sm:$0xff]
  %v561 = vld [vmem:[%s2 + $0x18] sm:$0xff]
  %v562 = vld [vmem:[%s2 + $0x20] sm:$0xff]
  %v563 = vld [vmem:[%s2 + $0x28] sm:$0xff]
  %v564 = vld [vmem:[%s2 + $0x30] sm:$0xff]
  %v565 = vld [vmem:[%s2 + $0x38] sm:$0xff]
  %v574 = vunpack.c.l.b16 %v558
  %v575 = vunpack.c.h.b16 %v558
  %v576 = vunpack.c.l.b16 %v559
  %v577 = vunpack.c.h.b16 %v559
  %v578 = vunpack.c.l.b16 %v560
  %v579 = vunpack.c.h.b16 %v560
  %v580 = vunpack.c.l.b16 %v561
  %v581 = vunpack.c.h.b16 %v561
  %v582 = vunpack.c.l.b16 %v562
  %v583 = vunpack.c.h.b16 %v562
  %v584 = vunpack.c.l.b16 %v563
  %v585 = vunpack.c.h.b16 %v563
  %v586 = vunpack.c.l.b16 %v564
  %v587 = vunpack.c.h.b16 %v564
  %v588 = vunpack.c.l.b16 %v565
  %v589 = vunpack.c.h.b16 %v565
  %v590 = vpack.c.b16 %v576, %v574
  %v591 = vpack.c.b16 %v577, %v575
  %v592 = vpack.c.b16 %v580, %v578
  %v593 = vpack.c.b16 %v581, %v579
  %v594 = vpack.c.b16 %v584, %v582
  %v595 = vpack.c.b16 %v585, %v583
  %v596 = vpack.c.b16 %v588, %v586
  %v597 = vpack.c.b16 %v589, %v587
  %v607 = vsel %vm271, %v556, 0
  %v610 = vsel %vm271, %v557, 0
  %612 = vmatprep.subr.bf16.mxu0 0
  %613 = vmatpush1.bf16.msra.mxu0 0
  %614 = vmatprep.subr.bf16.mxu0 0
  %615 = vmatpush1.bf16.msra.mxu0 0
  %616 = vmatprep.subr.bf16.mxu0 0
  %617 = vmatpush1.bf16.msra.mxu0 0
  %618 = vmatprep.subr.bf16.mxu0 0
  %619 = vmatpush1.bf16.msra.mxu0 0
  %620 = vmatprep.subr.bf16.mxu0 %v597
  %621 = vmatpush1.bf16.msra.mxu0 %v596
  %622 = vmatprep.subr.bf16.mxu0 %v595
  %623 = vmatpush1.bf16.msra.mxu0 %v594
  %624 = vmatprep.subr.bf16.mxu0 %v593
  %625 = vmatpush1.bf16.msra.mxu0 %v592
  %626 = vmatprep.subr.bf16.mxu0 %v591
  %627 = vmatpush1.bf16.msra.mxu0 %v590
  %628 = vmatprep.subr.bf16.mxu0 0
  %629 = vmatpush2.bf16.msra.mxu0 0
  %630 = vmatprep.subr.bf16.mxu0 0
  %631 = vmatpush2.bf16.msra.mxu0 0
  %632 = vmatprep.subr.bf16.mxu0 0
  %633 = vmatpush2.bf16.msra.mxu0 0
  %634 = vmatprep.subr.bf16.mxu0 0
  %635 = vmatpush2.bf16.msra.mxu0 0
  %636 = vmatprep.subr.bf16.mxu0 0
  %637 = vmatpush2.bf16.msra.mxu0 0
  %638 = vmatprep.subr.bf16.mxu0 0
  %639 = vmatpush2.bf16.msra.mxu0 0
  %640 = vmatprep.subr.bf16.mxu0 0
  %641 = vmatpush2.bf16.msra.mxu0 0
  %642 = vmatprep.subr.bf16.mxu0 0
  %643 = vmatpush2.bf16.msra.mxu0 0
  %644 = vmatprep.mubr.bf16.mxu0 0
  %645 = vmatmul.mubr.bf16.gmra.mxu0 %v607
  %v646 = vpop.f32.mrf.mxu0
  %v647 = vadd.f32 0.0, %v646
  %v648 = vpop.f32.mrf.mxu0
  %v649 = vadd.f32 0.0, %v648
  %v650 = vpop.f32.mrf.mxu0
  %v651 = vadd.f32 0.0, %v650
  %v652 = vpop.f32.mrf.mxu0
  %v653 = vadd.f32 0.0, %v652
  %654 = vmatprep.mubr.bf16.mxu0 0
  %655 = vmatmul.mubr.bf16.gmra.mxu0 %v610
  %v656 = vpop.f32.mrf.mxu0
  %v657 = vadd.f32 0.0, %v656
  %v658 = vpop.f32.mrf.mxu0
  %v659 = vadd.f32 0.0, %v658
  %v660 = vpop.f32.mrf.mxu0
  %v661 = vadd.f32 0.0, %v660
  %v662 = vpop.f32.mrf.mxu0
  %v663 = vadd.f32 0.0, %v662
  %664 = vdwg.mxu0
  %v665 = vrot.slane %v647, 7
  %v666 = vrot.slane %v651, 7
  %v667 = vrot.slane %v657, 7
  %v668 = vrot.slane %v661, 7
  %v669 = vlaneseq
  %v670 = vshrl.u32 %v669, 7
  %vm671 = vcmp.lt.s32.totalorder %v670, 1
  %v672 = vsel %vm671, %v667, %v668
  %v673 = vsel %vm671, %v666, %v667
  %v674 = vsel %vm671, %v665, %v666
  %v675 = vsel %vm671, %v668, %v665
  %677 = vset.pattern.permute.xlu0 0
  %678 = vperm.xlu0 %677, %v86
  %v679 = vpop.permute.xlu0 %678
  %682 = vset.pattern.permute.xlu0 0
  %683 = vperm.xlu0 %682, %v87
  %v684 = vpop.permute.xlu0 %683
  %687 = vset.pattern.permute.xlu0 0
  %688 = vperm.xlu0 %687, %v88
  %v689 = vpop.permute.xlu0 %688
  %692 = vset.pattern.permute.xlu0 0
  %693 = vperm.xlu0 %692, %v89
  %v694 = vpop.permute.xlu0 %693
  %v696 = vmul.f32 %v675, %v679
  %v697 = vmul.f32 %v674, %v684
  %v698 = vmul.f32 %v673, %v689
  %v699 = vmul.f32 %v672, %v694
  %704 = vrot.lane.b32.xlu0 %v696, 64
  %v705 = vpop.permute.xlu0 %704
  %706 = vrot.lane.b32.xlu0 %v697, 64
  %v707 = vpop.permute.xlu0 %706
  %708 = vrot.lane.b32.xlu0 %v698, 64
  %v709 = vpop.permute.xlu0 %708
  %710 = vrot.lane.b32.xlu0 %v699, 64
  %v711 = vpop.permute.xlu0 %710
  %v716 = vadd.f32 %v647, %v705
  %v717 = vadd.f32 %v651, %v707
  %v718 = vadd.f32 %v657, %v709
  %v719 = vadd.f32 %v661, %v711
  %v720 = vrot.slane %v649, 1
  %v721 = vrot.slane %v653, 1
  %v722 = vrot.slane %v659, 1
  %v723 = vrot.slane %v663, 1
  %vm724 = vcmp.lt.s32.totalorder %v670, 7
  %v725 = vsel %vm724, %v722, %v723
  %v726 = vsel %vm724, %v721, %v722
  %v727 = vsel %vm724, %v720, %v721
  %v728 = vsel %vm724, %v723, %v720
  %729 = vset.pattern.permute.xlu0 1
  %730 = vperm.xlu0 %729, %v86
  %v731 = vpop.permute.xlu0 %730
  %733 = vset.pattern.permute.xlu0 1
  %734 = vperm.xlu0 %733, %v87
  %v735 = vpop.permute.xlu0 %734
  %737 = vset.pattern.permute.xlu0 1
  %738 = vperm.xlu0 %737, %v88
  %v739 = vpop.permute.xlu0 %738
  %741 = vset.pattern.permute.xlu0 1
  %742 = vperm.xlu0 %741, %v89
  %v743 = vpop.permute.xlu0 %742
  %v745 = vmul.f32 %v727, %v731
  %v746 = vmul.f32 %v726, %v735
  %v747 = vmul.f32 %v725, %v739
  %v748 = vmul.f32 %v728, %v743
  %753 = vrot.lane.b32.xlu0 %v745, 64
  %v754 = vpop.permute.xlu0 %753
  %755 = vrot.lane.b32.xlu0 %v746, 64
  %v756 = vpop.permute.xlu0 %755
  %757 = vrot.lane.b32.xlu0 %v747, 64
  %v758 = vpop.permute.xlu0 %757
  %759 = vrot.lane.b32.xlu0 %v748, 64
  %v760 = vpop.permute.xlu0 %759
  %v765 = vadd.f32 %v716, %v754
  %v766 = vadd.f32 %v717, %v756
  %v767 = vadd.f32 %v718, %v758
  %v768 = vadd.f32 %v719, %v760
  %vm769 = vcmask 1048064
  %v770 = vsel %vm769, %v765, 0.0
  %v771 = vsel %vm769, %v766, 0.0
  %v772 = vadd.f32 %v770, %v771
  %v773 = vsel %vm769, %v767, 0.0
  %v774 = vadd.f32 %v772, %v773
  %v775 = vsel %vm769, %v768, 0.0
  %v776 = vadd.f32 %v774, %v775
  %v777 = vrot.slane %v776, 4
  %v778 = vadd.f32 %v776, %v777
  %v779 = vrot.slane %v778, 2
  %v780 = vadd.f32 %v778, %v779
  %v781 = vrot.slane %v780, 1
  %v782 = vadd.f32 %v780, %v781
  %784 = vrot.lane.b32.xlu0 %v782, 64
  %v785 = vpop.permute.xlu0 %784
  %v786 = vsel %vm271, %v785, 0
  %788 = vmatprep.subr.mxu0 0.0
  %789 = vmatpush1.msra.mxu0 0.0
  %790 = vmatprep.subr.mxu0 0.0
  %791 = vmatpush1.msra.mxu0 0.0
  %792 = vmatprep.subr.mxu0 0.0
  %793 = vmatpush1.msra.mxu0 0.0
  %794 = vmatprep.subr.mxu0 0.0
  %795 = vmatpush1.msra.mxu0 0.0
  %796 = vmatprep.subr.mxu0 0.0
  %797 = vmatpush1.msra.mxu0 0.0
  %798 = vmatprep.subr.mxu0 0.0
  %799 = vmatpush1.msra.mxu0 0.0
  %800 = vmatprep.subr.mxu0 0.0
  %801 = vmatpush1.msra.mxu0 0.0
  %802 = vmatprep.subr.mxu0 0.0
  %803 = vmatpush1.msra.mxu0 0.0
  %804 = vmatprep.subr.mxu0 0.0
  %805 = vmatpush1.msra.mxu0 %v48
  %806 = vmatprep.subr.mxu0 0.0
  %807 = vmatpush1.msra.mxu0 %v47
  %808 = vmatprep.subr.mxu0 0.0
  %809 = vmatpush1.msra.mxu0 %v46
  %810 = vmatprep.subr.mxu0 0.0
  %811 = vmatpush1.msra.mxu0 %v45
  %812 = vmatprep.subr.mxu0 0.0
  %813 = vmatpush1.msra.mxu0 %v44
  %814 = vmatprep.subr.mxu0 0.0
  %815 = vmatpush1.msra.mxu0 %v43
  %816 = vmatprep.subr.mxu0 0.0
  %817 = vmatpush1.msra.mxu0 %v42
  %818 = vmatprep.subr.mxu0 0.0
  %819 = vmatpush1.msra.mxu0 %v41
  %820 = vmatprep.subr.mxu0 0.0
  %821 = vmatpush2.msra.mxu0 0.0
  %822 = vmatprep.subr.mxu0 0.0
  %823 = vmatpush2.msra.mxu0 0.0
  %824 = vmatprep.subr.mxu0 0.0
  %825 = vmatpush2.msra.mxu0 0.0
  %826 = vmatprep.subr.mxu0 0.0
  %827 = vmatpush2.msra.mxu0 0.0
  %828 = vmatprep.subr.mxu0 0.0
  %829 = vmatpush2.msra.mxu0 0.0
  %830 = vmatprep.subr.mxu0 0.0
  %831 = vmatpush2.msra.mxu0 0.0
  %832 = vmatprep.subr.mxu0 0.0
  %833 = vmatpush2.msra.mxu0 0.0
  %834 = vmatprep.subr.mxu0 0.0
  %835 = vmatpush2.msra.mxu0 0.0
  %836 = vmatprep.subr.mxu0 0.0
  %837 = vmatpush2.msra.mxu0 0.0
  %838 = vmatprep.subr.mxu0 0.0
  %839 = vmatpush2.msra.mxu0 0.0
  %840 = vmatprep.subr.mxu0 0.0
  %841 = vmatpush2.msra.mxu0 0.0
  %842 = vmatprep.subr.mxu0 0.0
  %843 = vmatpush2.msra.mxu0 0.0
  %844 = vmatprep.subr.mxu0 0.0
  %845 = vmatpush2.msra.mxu0 0.0
  %846 = vmatprep.subr.mxu0 0.0
  %847 = vmatpush2.msra.mxu0 0.0
  %848 = vmatprep.subr.mxu0 0.0
  %849 = vmatpush2.msra.mxu0 0.0
  %850 = vmatprep.subr.mxu0 0.0
  %851 = vmatpush2.msra.mxu0 0.0
  %852 = vmatprep.mubr.f32.mxu0 0.0
  %853 = vmatmul.mubr.f32.gmra.mxu0 %v786
  %v854 = vpop.f32.mrf.mxu0
  %v855 = vadd.f32 0.0, %v854
  %v856 = vpop.f32.mrf.mxu0
  %857 = vdwg.mxu0
  %v858 = vmul.f32 %v765, %v765
  %v859 = vmul.f32 %v766, %v766
  %v860 = vmul.f32 %v767, %v767
  %v861 = vmul.f32 %v768, %v768
  %v862 = vsel %vm769, %v858, 0.0
  %v863 = vsel %vm769, %v859, 0.0
  %v864 = vadd.f32 %v862, %v863
  %v865 = vsel %vm769, %v860, 0.0
  %v866 = vadd.f32 %v864, %v865
  %v867 = vsel %vm769, %v861, 0.0
  %v868 = vadd.f32 %v866, %v867
  %v869 = vrot.slane %v868, 4
  %v870 = vadd.f32 %v868, %v869
  %v871 = vrot.slane %v870, 2
  %v872 = vadd.f32 %v870, %v871
  %v873 = vrot.slane %v872, 1
  %v874 = vadd.f32 %v872, %v873
  %876 = vrot.lane.b32.xlu0 %v874, 64
  %v877 = vpop.permute.xlu0 %876
  %v878 = vsel %vm271, %v877, 0
  %880 = vmatprep.subr.mxu0 0.0
  %881 = vmatpush1.msra.mxu0 0.0
  %882 = vmatprep.subr.mxu0 0.0
  %883 = vmatpush1.msra.mxu0 0.0
  %884 = vmatprep.subr.mxu0 0.0
  %885 = vmatpush1.msra.mxu0 0.0
  %886 = vmatprep.subr.mxu0 0.0
  %887 = vmatpush1.msra.mxu0 0.0
  %888 = vmatprep.subr.mxu0 0.0
  %889 = vmatpush1.msra.mxu0 0.0
  %890 = vmatprep.subr.mxu0 0.0
  %891 = vmatpush1.msra.mxu0 0.0
  %892 = vmatprep.subr.mxu0 0.0
  %893 = vmatpush1.msra.mxu0 0.0
  %894 = vmatprep.subr.mxu0 0.0
  %895 = vmatpush1.msra.mxu0 0.0
  %896 = vmatprep.subr.mxu0 0.0
  %897 = vmatpush1.msra.mxu0 %v48
  %898 = vmatprep.subr.mxu0 0.0
  %899 = vmatpush1.msra.mxu0 %v47
  %900 = vmatprep.subr.mxu0 0.0
  %901 = vmatpush1.msra.mxu0 %v46
  %902 = vmatprep.subr.mxu0 0.0
  %903 = vmatpush1.msra.mxu0 %v45
  %904 = vmatprep.subr.mxu0 0.0
  %905 = vmatpush1.msra.mxu0 %v44
  %906 = vmatprep.subr.mxu0 0.0
  %907 = vmatpush1.msra.mxu0 %v43
  %908 = vmatprep.subr.mxu0 0.0
  %909 = vmatpush1.msra.mxu0 %v42
  %910 = vmatprep.subr.mxu0 0.0
  %911 = vmatpush1.msra.mxu0 %v41
  %912 = vmatprep.subr.mxu0 0.0
  %913 = vmatpush2.msra.mxu0 0.0
  %914 = vmatprep.subr.mxu0 0.0
  %915 = vmatpush2.msra.mxu0 0.0
  %916 = vmatprep.subr.mxu0 0.0
  %917 = vmatpush2.msra.mxu0 0.0
  %918 = vmatprep.subr.mxu0 0.0
  %919 = vmatpush2.msra.mxu0 0.0
  %920 = vmatprep.subr.mxu0 0.0
  %921 = vmatpush2.msra.mxu0 0.0
  %922 = vmatprep.subr.mxu0 0.0
  %923 = vmatpush2.msra.mxu0 0.0
  %924 = vmatprep.subr.mxu0 0.0
  %925 = vmatpush2.msra.mxu0 0.0
  %926 = vmatprep.subr.mxu0 0.0
  %927 = vmatpush2.msra.mxu0 0.0
  %928 = vmatprep.subr.mxu0 0.0
  %929 = vmatpush2.msra.mxu0 0.0
  %930 = vmatprep.subr.mxu0 0.0
  %931 = vmatpush2.msra.mxu0 0.0
  %932 = vmatprep.subr.mxu0 0.0
  %933 = vmatpush2.msra.mxu0 0.0
  %934 = vmatprep.subr.mxu0 0.0
  %935 = vmatpush2.msra.mxu0 0.0
  %936 = vmatprep.subr.mxu0 0.0
  %937 = vmatpush2.msra.mxu0 0.0
  %938 = vmatprep.subr.mxu0 0.0
  %939 = vmatpush2.msra.mxu0 0.0
  %940 = vmatprep.subr.mxu0 0.0
  %941 = vmatpush2.msra.mxu0 0.0
  %942 = vmatprep.subr.mxu0 0.0
  %943 = vmatpush2.msra.mxu0 0.0
  %944 = vmatprep.mubr.f32.mxu0 0.0
  %945 = vmatmul.mubr.f32.gmra.mxu0 %v878
  %v946 = vpop.f32.mrf.mxu0
  %v947 = vadd.f32 0.0, %v946
  %v948 = vpop.f32.mrf.mxu0
  %949 = vdwg.mxu0
  %v950 = vmul.f32 %v855, 0.001953125
  %v951 = vmul.f32 %v947, 0.001953125
  %v952 = vmul.f32 %v950, %v950
  %v953 = vsub.f32 %v951, %v952
  %v954 = vmax.f32 %v953, 0.0
  %v955 = vadd.f32 %v954, 1e-05
  %v956 = vrsqrt.pop %v955
  %v957 = vmul.f32 %v955, %v956
  %vm958 = vcmp.eq.f32.partialorder %v955, inf
  %v959 = vsel %vm958, %v955, %v957
  %vm960 = vcmp.eq.f32.partialorder %v955, 0.0
  %v961 = vand.u32 %v955, 2147483648
  %v962 = vsel %vm960, %v961, %v959
  %v963 = vadd.f32 %v950, %v962
  %v965 = vsel %vm462, %v963, 0
  %967 = vmatprep.subr.mxu0 0.0
  %968 = vmatpush1.msra.mxu0 0.0
  %969 = vmatprep.subr.mxu0 0.0
  %970 = vmatpush1.msra.mxu0 0.0
  %971 = vmatprep.subr.mxu0 0.0
  %972 = vmatpush1.msra.mxu0 0.0
  %973 = vmatprep.subr.mxu0 0.0
  %974 = vmatpush1.msra.mxu0 0.0
  %975 = vmatprep.subr.mxu0 0.0
  %976 = vmatpush1.msra.mxu0 0.0
  %977 = vmatprep.subr.mxu0 0.0
  %978 = vmatpush1.msra.mxu0 0.0
  %979 = vmatprep.subr.mxu0 0.0
  %980 = vmatpush1.msra.mxu0 0.0
  %981 = vmatprep.subr.mxu0 0.0
  %982 = vmatpush1.msra.mxu0 0.0
  %983 = vmatprep.subr.mxu0 0.0
  %984 = vmatpush1.msra.mxu0 0.0
  %985 = vmatprep.subr.mxu0 0.0
  %986 = vmatpush1.msra.mxu0 0.0
  %987 = vmatprep.subr.mxu0 0.0
  %988 = vmatpush1.msra.mxu0 0.0
  %989 = vmatprep.subr.mxu0 0.0
  %990 = vmatpush1.msra.mxu0 0.0
  %991 = vmatprep.subr.mxu0 0.0
  %992 = vmatpush1.msra.mxu0 0.0
  %993 = vmatprep.subr.mxu0 0.0
  %994 = vmatpush1.msra.mxu0 0.0
  %995 = vmatprep.subr.mxu0 0.0
  %996 = vmatpush1.msra.mxu0 0.0
  %997 = vmatprep.subr.mxu0 0.0
  %998 = vmatpush1.msra.mxu0 %v468
  %999 = vmatprep.subr.mxu0 0.0
  %1000 = vmatpush2.msra.mxu0 0.0
  %1001 = vmatprep.subr.mxu0 0.0
  %1002 = vmatpush2.msra.mxu0 0.0
  %1003 = vmatprep.subr.mxu0 0.0
  %1004 = vmatpush2.msra.mxu0 0.0
  %1005 = vmatprep.subr.mxu0 0.0
  %1006 = vmatpush2.msra.mxu0 0.0
  %1007 = vmatprep.subr.mxu0 0.0
  %1008 = vmatpush2.msra.mxu0 0.0
  %1009 = vmatprep.subr.mxu0 0.0
  %1010 = vmatpush2.msra.mxu0 0.0
  %1011 = vmatprep.subr.mxu0 0.0
  %1012 = vmatpush2.msra.mxu0 0.0
  %1013 = vmatprep.subr.mxu0 0.0
  %1014 = vmatpush2.msra.mxu0 0.0
  %1015 = vmatprep.subr.mxu0 0.0
  %1016 = vmatpush2.msra.mxu0 0.0
  %1017 = vmatprep.subr.mxu0 0.0
  %1018 = vmatpush2.msra.mxu0 0.0
  %1019 = vmatprep.subr.mxu0 0.0
  %1020 = vmatpush2.msra.mxu0 0.0
  %1021 = vmatprep.subr.mxu0 0.0
  %1022 = vmatpush2.msra.mxu0 0.0
  %1023 = vmatprep.subr.mxu0 0.0
  %1024 = vmatpush2.msra.mxu0 0.0
  %1025 = vmatprep.subr.mxu0 0.0
  %1026 = vmatpush2.msra.mxu0 0.0
  %1027 = vmatprep.subr.mxu0 0.0
  %1028 = vmatpush2.msra.mxu0 0.0
  %1029 = vmatprep.subr.mxu0 0.0
  %1030 = vmatpush2.msra.mxu0 0.0
  %1031 = vmatprep.mubr.f32.mxu0 0.0
  %1032 = vmatmul.mubr.f32.gmra.mxu0 %v965
  %v1033 = vpop.f32.mrf.mxu0
  %v1034 = vadd.f32 0.0, %v1033
  %v1035 = vpop.f32.mrf.mxu0
  %1036 = vdwg.mxu0
  %v1037 = vlaneseq
  %v1038 = vshrl.u32 %v1037, 7
  %v1039 = vsub.s32 0, %v1038
  %v1040 = vrot.slane %v1034, %v1039
  %1042 = vrot.lane.b32.xlu0 %v1040, 64
  %v1043 = vpop.permute.xlu0 %1042
  %vm1045 = vcmp.ge.f32.partialorder %v765, %v1043
  %vm1046 = vcmp.ge.f32.partialorder %v766, %v1043
  %vm1047 = vcmp.ge.f32.partialorder %v767, %v1043
  %vm1048 = vcmp.ge.f32.partialorder %v768, %v1043
  %v1049 = vsel %vm1045, 1, 0
  %v1050 = vsel %vm1046, 1, 0
  %v1051 = vsel %vm1047, 1, 0
  %v1052 = vsel %vm1048, 1, 0
  %v1053 = vcvt.s32.f32 %v1049
  %v1054 = vcvt.s32.f32 %v1050
  %v1055 = vcvt.s32.f32 %v1051
  %v1056 = vcvt.s32.f32 %v1052
  %v1057 = vpack.c.bf16 %v1054, %v1053
  %v1058 = vpack.c.bf16 %v1056, %v1055
  %v1059 = vld [vmem:[%s3] sm:$0xff]
  %v1060 = vld [vmem:[%s3 + $0x8] sm:$0xff]
  %v1061 = vld [vmem:[%s3 + $0x10] sm:$0xff]
  %v1062 = vld [vmem:[%s3 + $0x18] sm:$0xff]
  %v1063 = vld [vmem:[%s3 + $0x20] sm:$0xff]
  %v1064 = vld [vmem:[%s3 + $0x28] sm:$0xff]
  %v1065 = vld [vmem:[%s3 + $0x30] sm:$0xff]
  %v1066 = vld [vmem:[%s3 + $0x38] sm:$0xff]
  %1069 = vrot.lane.b32.xlu0 %v1057, 64
  %v1070 = vpop.permute.xlu0 %1069
  %1071 = vrot.lane.b32.xlu0 %v1058, 64
  %v1072 = vpop.permute.xlu0 %1071
  %v1081 = vunpack.c.l.b16 %v1059
  %v1082 = vunpack.c.h.b16 %v1059
  %v1083 = vunpack.c.l.b16 %v1060
  %v1084 = vunpack.c.h.b16 %v1060
  %v1085 = vunpack.c.l.b16 %v1061
  %v1086 = vunpack.c.h.b16 %v1061
  %v1087 = vunpack.c.l.b16 %v1062
  %v1088 = vunpack.c.h.b16 %v1062
  %v1089 = vunpack.c.l.b16 %v1063
  %v1090 = vunpack.c.h.b16 %v1063
  %v1091 = vunpack.c.l.b16 %v1064
  %v1092 = vunpack.c.h.b16 %v1064
  %v1093 = vunpack.c.l.b16 %v1065
  %v1094 = vunpack.c.h.b16 %v1065
  %v1095 = vunpack.c.l.b16 %v1066
  %v1096 = vunpack.c.h.b16 %v1066
  %v1097 = vpack.c.b16 %v1083, %v1081
  %v1098 = vpack.c.b16 %v1084, %v1082
  %v1099 = vpack.c.b16 %v1087, %v1085
  %v1100 = vpack.c.b16 %v1088, %v1086
  %v1101 = vpack.c.b16 %v1091, %v1089
  %v1102 = vpack.c.b16 %v1092, %v1090
  %v1103 = vpack.c.b16 %v1095, %v1093
  %v1104 = vpack.c.b16 %v1096, %v1094
  %v1114 = vsel %vm271, %v1070, 0
  %v1117 = vsel %vm271, %v1072, 0
  %1119 = vmatprep.subr.bf16.mxu0 0
  %1120 = vmatpush1.bf16.msra.mxu0 0
  %1121 = vmatprep.subr.bf16.mxu0 0
  %1122 = vmatpush1.bf16.msra.mxu0 0
  %1123 = vmatprep.subr.bf16.mxu0 0
  %1124 = vmatpush1.bf16.msra.mxu0 0
  %1125 = vmatprep.subr.bf16.mxu0 0
  %1126 = vmatpush1.bf16.msra.mxu0 0
  %1127 = vmatprep.subr.bf16.mxu0 %v1104
  %1128 = vmatpush1.bf16.msra.mxu0 %v1103
  %1129 = vmatprep.subr.bf16.mxu0 %v1102
  %1130 = vmatpush1.bf16.msra.mxu0 %v1101
  %1131 = vmatprep.subr.bf16.mxu0 %v1100
  %1132 = vmatpush1.bf16.msra.mxu0 %v1099
  %1133 = vmatprep.subr.bf16.mxu0 %v1098
  %1134 = vmatpush1.bf16.msra.mxu0 %v1097
  %1135 = vmatprep.subr.bf16.mxu0 0
  %1136 = vmatpush2.bf16.msra.mxu0 0
  %1137 = vmatprep.subr.bf16.mxu0 0
  %1138 = vmatpush2.bf16.msra.mxu0 0
  %1139 = vmatprep.subr.bf16.mxu0 0
  %1140 = vmatpush2.bf16.msra.mxu0 0
  %1141 = vmatprep.subr.bf16.mxu0 0
  %1142 = vmatpush2.bf16.msra.mxu0 0
  %1143 = vmatprep.subr.bf16.mxu0 0
  %1144 = vmatpush2.bf16.msra.mxu0 0
  %1145 = vmatprep.subr.bf16.mxu0 0
  %1146 = vmatpush2.bf16.msra.mxu0 0
  %1147 = vmatprep.subr.bf16.mxu0 0
  %1148 = vmatpush2.bf16.msra.mxu0 0
  %1149 = vmatprep.subr.bf16.mxu0 0
  %1150 = vmatpush2.bf16.msra.mxu0 0
  %1151 = vmatprep.mubr.bf16.mxu0 0
  %1152 = vmatmul.mubr.bf16.gmra.mxu0 %v1114
  %v1153 = vpop.f32.mrf.mxu0
  %v1154 = vadd.f32 0.0, %v1153
  %v1155 = vpop.f32.mrf.mxu0
  %v1156 = vadd.f32 0.0, %v1155
  %v1157 = vpop.f32.mrf.mxu0
  %v1158 = vadd.f32 0.0, %v1157
  %v1159 = vpop.f32.mrf.mxu0
  %v1160 = vadd.f32 0.0, %v1159
  %1161 = vmatprep.mubr.bf16.mxu0 0
  %1162 = vmatmul.mubr.bf16.gmra.mxu0 %v1117
  %v1163 = vpop.f32.mrf.mxu0
  %v1164 = vadd.f32 0.0, %v1163
  %v1165 = vpop.f32.mrf.mxu0
  %v1166 = vadd.f32 0.0, %v1165
  %v1167 = vpop.f32.mrf.mxu0
  %v1168 = vadd.f32 0.0, %v1167
  %v1169 = vpop.f32.mrf.mxu0
  %v1170 = vadd.f32 0.0, %v1169
  %1171 = vdwg.mxu0
  %v1172 = vadd.f32 %v1154, %v1158
  %v1173 = vadd.f32 %v1172, %v1164
  %v1174 = vadd.f32 %v1173, %v1168
  %v1175 = vrot.slane %v1174, 4
  %v1176 = vadd.f32 %v1174, %v1175
  %v1177 = vrot.slane %v1176, 2
  %v1178 = vadd.f32 %v1176, %v1177
  %v1179 = vrot.slane %v1178, 1
  %v1180 = vadd.f32 %v1178, %v1179
  %v1181 = vadd.f32 %v1156, %v1160
  %v1182 = vadd.f32 %v1181, %v1166
  %v1183 = vadd.f32 %v1182, %v1170
  %v1184 = vrot.slane %v1183, 4
  %v1185 = vadd.f32 %v1183, %v1184
  %v1186 = vrot.slane %v1185, 2
  %v1187 = vadd.f32 %v1185, %v1186
  %v1188 = vrot.slane %v1187, 1
  %v1189 = vadd.f32 %v1187, %v1188
  %1190 = vmatprep.subr.mxu0 0.0
  %1191 = vmatpush1.msra.mxu0 %v65
  %1192 = vmatprep.subr.mxu0 0.0
  %1193 = vmatpush1.msra.mxu0 %v64
  %1194 = vmatprep.subr.mxu0 0.0
  %1195 = vmatpush1.msra.mxu0 %v63
  %1196 = vmatprep.subr.mxu0 0.0
  %1197 = vmatpush1.msra.mxu0 %v62
  %1198 = vmatprep.subr.mxu0 0.0
  %1199 = vmatpush1.msra.mxu0 %v61
  %1200 = vmatprep.subr.mxu0 0.0
  %1201 = vmatpush1.msra.mxu0 %v60
  %1202 = vmatprep.subr.mxu0 0.0
  %1203 = vmatpush1.msra.mxu0 %v59
  %1204 = vmatprep.subr.mxu0 0.0
  %1205 = vmatpush1.msra.mxu0 %v58
  %1206 = vmatprep.subr.mxu0 0.0
  %1207 = vmatpush1.msra.mxu0 %v57
  %1208 = vmatprep.subr.mxu0 0.0
  %1209 = vmatpush1.msra.mxu0 %v56
  %1210 = vmatprep.subr.mxu0 0.0
  %1211 = vmatpush1.msra.mxu0 %v55
  %1212 = vmatprep.subr.mxu0 0.0
  %1213 = vmatpush1.msra.mxu0 %v54
  %1214 = vmatprep.subr.mxu0 0.0
  %1215 = vmatpush1.msra.mxu0 %v53
  %1216 = vmatprep.subr.mxu0 0.0
  %1217 = vmatpush1.msra.mxu0 %v52
  %1218 = vmatprep.subr.mxu0 0.0
  %1219 = vmatpush1.msra.mxu0 %v51
  %1220 = vmatprep.subr.mxu0 0.0
  %1221 = vmatpush1.msra.mxu0 %v50
  %1222 = vmatprep.subr.mxu0 0.0
  %1223 = vmatpush2.msra.mxu0 %v81
  %1224 = vmatprep.subr.mxu0 0.0
  %1225 = vmatpush2.msra.mxu0 %v80
  %1226 = vmatprep.subr.mxu0 0.0
  %1227 = vmatpush2.msra.mxu0 %v79
  %1228 = vmatprep.subr.mxu0 0.0
  %1229 = vmatpush2.msra.mxu0 %v78
  %1230 = vmatprep.subr.mxu0 0.0
  %1231 = vmatpush2.msra.mxu0 %v77
  %1232 = vmatprep.subr.mxu0 0.0
  %1233 = vmatpush2.msra.mxu0 %v76
  %1234 = vmatprep.subr.mxu0 0.0
  %1235 = vmatpush2.msra.mxu0 %v75
  %1236 = vmatprep.subr.mxu0 0.0
  %1237 = vmatpush2.msra.mxu0 %v74
  %1238 = vmatprep.subr.mxu0 0.0
  %1239 = vmatpush2.msra.mxu0 %v73
  %1240 = vmatprep.subr.mxu0 0.0
  %1241 = vmatpush2.msra.mxu0 %v72
  %1242 = vmatprep.subr.mxu0 0.0
  %1243 = vmatpush2.msra.mxu0 %v71
  %1244 = vmatprep.subr.mxu0 0.0
  %1245 = vmatpush2.msra.mxu0 %v70
  %1246 = vmatprep.subr.mxu0 0.0
  %1247 = vmatpush2.msra.mxu0 %v69
  %1248 = vmatprep.subr.mxu0 0.0
  %1249 = vmatpush2.msra.mxu0 %v68
  %1250 = vmatprep.subr.mxu0 0.0
  %1251 = vmatpush2.msra.mxu0 %v67
  %1252 = vmatprep.subr.mxu0 0.0
  %1253 = vmatpush2.msra.mxu0 %v66
  %1254 = vmatprep.mubr.f32.mxu0 %v1189
  %1255 = vmatmul.mubr.f32.gmra.mxu0 %v1180
  %v1256 = vpop.f32.mrf.mxu0
  %v1257 = vadd.f32 0.0, %v1256
  %v1258 = vpop.f32.mrf.mxu0
  %1259 = vdwg.mxu0
  %v1260 = vmul.f32 %v1154, %v1154
  %v1261 = vmul.f32 %v1156, %v1156
  %v1262 = vmul.f32 %v1158, %v1158
  %v1263 = vmul.f32 %v1160, %v1160
  %v1264 = vmul.f32 %v1164, %v1164
  %v1265 = vmul.f32 %v1166, %v1166
  %v1266 = vmul.f32 %v1168, %v1168
  %v1267 = vmul.f32 %v1170, %v1170
  %v1268 = vadd.f32 %v1260, %v1262
  %v1269 = vadd.f32 %v1268, %v1264
  %v1270 = vadd.f32 %v1269, %v1266
  %v1271 = vrot.slane %v1270, 4
  %v1272 = vadd.f32 %v1270, %v1271
  %v1273 = vrot.slane %v1272, 2
  %v1274 = vadd.f32 %v1272, %v1273
  %v1275 = vrot.slane %v1274, 1
  %v1276 = vadd.f32 %v1274, %v1275
  %v1277 = vadd.f32 %v1261, %v1263
  %v1278 = vadd.f32 %v1277, %v1265
  %v1279 = vadd.f32 %v1278, %v1267
  %v1280 = vrot.slane %v1279, 4
  %v1281 = vadd.f32 %v1279, %v1280
  %v1282 = vrot.slane %v1281, 2
  %v1283 = vadd.f32 %v1281, %v1282
  %v1284 = vrot.slane %v1283, 1
  %v1285 = vadd.f32 %v1283, %v1284
  %1286 = vmatprep.subr.mxu0 0.0
  %1287 = vmatpush1.msra.mxu0 %v65
  %1288 = vmatprep.subr.mxu0 0.0
  %1289 = vmatpush1.msra.mxu0 %v64
  %1290 = vmatprep.subr.mxu0 0.0
  %1291 = vmatpush1.msra.mxu0 %v63
  %1292 = vmatprep.subr.mxu0 0.0
  %1293 = vmatpush1.msra.mxu0 %v62
  %1294 = vmatprep.subr.mxu0 0.0
  %1295 = vmatpush1.msra.mxu0 %v61
  %1296 = vmatprep.subr.mxu0 0.0
  %1297 = vmatpush1.msra.mxu0 %v60
  %1298 = vmatprep.subr.mxu0 0.0
  %1299 = vmatpush1.msra.mxu0 %v59
  %1300 = vmatprep.subr.mxu0 0.0
  %1301 = vmatpush1.msra.mxu0 %v58
  %1302 = vmatprep.subr.mxu0 0.0
  %1303 = vmatpush1.msra.mxu0 %v57
  %1304 = vmatprep.subr.mxu0 0.0
  %1305 = vmatpush1.msra.mxu0 %v56
  %1306 = vmatprep.subr.mxu0 0.0
  %1307 = vmatpush1.msra.mxu0 %v55
  %1308 = vmatprep.subr.mxu0 0.0
  %1309 = vmatpush1.msra.mxu0 %v54
  %1310 = vmatprep.subr.mxu0 0.0
  %1311 = vmatpush1.msra.mxu0 %v53
  %1312 = vmatprep.subr.mxu0 0.0
  %1313 = vmatpush1.msra.mxu0 %v52
  %1314 = vmatprep.subr.mxu0 0.0
  %1315 = vmatpush1.msra.mxu0 %v51
  %1316 = vmatprep.subr.mxu0 0.0
  %1317 = vmatpush1.msra.mxu0 %v50
  %1318 = vmatprep.subr.mxu0 0.0
  %1319 = vmatpush2.msra.mxu0 %v81
  %1320 = vmatprep.subr.mxu0 0.0
  %1321 = vmatpush2.msra.mxu0 %v80
  %1322 = vmatprep.subr.mxu0 0.0
  %1323 = vmatpush2.msra.mxu0 %v79
  %1324 = vmatprep.subr.mxu0 0.0
  %1325 = vmatpush2.msra.mxu0 %v78
  %1326 = vmatprep.subr.mxu0 0.0
  %1327 = vmatpush2.msra.mxu0 %v77
  %1328 = vmatprep.subr.mxu0 0.0
  %1329 = vmatpush2.msra.mxu0 %v76
  %1330 = vmatprep.subr.mxu0 0.0
  %1331 = vmatpush2.msra.mxu0 %v75
  %1332 = vmatprep.subr.mxu0 0.0
  %1333 = vmatpush2.msra.mxu0 %v74
  %1334 = vmatprep.subr.mxu0 0.0
  %1335 = vmatpush2.msra.mxu0 %v73
  %1336 = vmatprep.subr.mxu0 0.0
  %1337 = vmatpush2.msra.mxu0 %v72
  %1338 = vmatprep.subr.mxu0 0.0
  %1339 = vmatpush2.msra.mxu0 %v71
  %1340 = vmatprep.subr.mxu0 0.0
  %1341 = vmatpush2.msra.mxu0 %v70
  %1342 = vmatprep.subr.mxu0 0.0
  %1343 = vmatpush2.msra.mxu0 %v69
  %1344 = vmatprep.subr.mxu0 0.0
  %1345 = vmatpush2.msra.mxu0 %v68
  %1346 = vmatprep.subr.mxu0 0.0
  %1347 = vmatpush2.msra.mxu0 %v67
  %1348 = vmatprep.subr.mxu0 0.0
  %1349 = vmatpush2.msra.mxu0 %v66
  %1350 = vmatprep.mubr.f32.mxu0 %v1285
  %1351 = vmatmul.mubr.f32.gmra.mxu0 %v1276
  %v1352 = vpop.f32.mrf.mxu0
  %v1353 = vadd.f32 0.0, %v1352
  %v1354 = vpop.f32.mrf.mxu0
  %1355 = vdwg.mxu0
  %v1356 = vmul.f32 %v1257, 0.001953125
  %v1357 = vmul.f32 %v1353, 0.001953125
  %v1358 = vmul.f32 %v1356, %v1356
  %v1359 = vsub.f32 %v1357, %v1358
  %v1360 = vmax.f32 %v1359, 0.0
  %v1361 = vadd.f32 %v33, %v35
  %v1362 = vadd.f32 %v1361, %v37
  %v1363 = vadd.f32 %v1362, %v39
  %v1364 = vrot.slane %v1363, 4
  %v1365 = vadd.f32 %v1363, %v1364
  %v1366 = vrot.slane %v1365, 2
  %v1367 = vadd.f32 %v1365, %v1366
  %v1368 = vrot.slane %v1367, 1
  %v1369 = vadd.f32 %v1367, %v1368
  %v1370 = vadd.f32 %v34, %v36
  %v1371 = vadd.f32 %v1370, %v38
  %v1372 = vadd.f32 %v1371, %v40
  %v1373 = vrot.slane %v1372, 4
  %v1374 = vadd.f32 %v1372, %v1373
  %v1375 = vrot.slane %v1374, 2
  %v1376 = vadd.f32 %v1374, %v1375
  %v1377 = vrot.slane %v1376, 1
  %v1378 = vadd.f32 %v1376, %v1377
  %1379 = vmatprep.subr.mxu0 0.0
  %1380 = vmatpush1.msra.mxu0 %v65
  %1381 = vmatprep.subr.mxu0 0.0
  %1382 = vmatpush1.msra.mxu0 %v64
  %1383 = vmatprep.subr.mxu0 0.0
  %1384 = vmatpush1.msra.mxu0 %v63
  %1385 = vmatprep.subr.mxu0 0.0
  %1386 = vmatpush1.msra.mxu0 %v62
  %1387 = vmatprep.subr.mxu0 0.0
  %1388 = vmatpush1.msra.mxu0 %v61
  %1389 = vmatprep.subr.mxu0 0.0
  %1390 = vmatpush1.msra.mxu0 %v60
  %1391 = vmatprep.subr.mxu0 0.0
  %1392 = vmatpush1.msra.mxu0 %v59
  %1393 = vmatprep.subr.mxu0 0.0
  %1394 = vmatpush1.msra.mxu0 %v58
  %1395 = vmatprep.subr.mxu0 0.0
  %1396 = vmatpush1.msra.mxu0 %v57
  %1397 = vmatprep.subr.mxu0 0.0
  %1398 = vmatpush1.msra.mxu0 %v56
  %1399 = vmatprep.subr.mxu0 0.0
  %1400 = vmatpush1.msra.mxu0 %v55
  %1401 = vmatprep.subr.mxu0 0.0
  %1402 = vmatpush1.msra.mxu0 %v54
  %1403 = vmatprep.subr.mxu0 0.0
  %1404 = vmatpush1.msra.mxu0 %v53
  %1405 = vmatprep.subr.mxu0 0.0
  %1406 = vmatpush1.msra.mxu0 %v52
  %1407 = vmatprep.subr.mxu0 0.0
  %1408 = vmatpush1.msra.mxu0 %v51
  %1409 = vmatprep.subr.mxu0 0.0
  %1410 = vmatpush1.msra.mxu0 %v50
  %1411 = vmatprep.subr.mxu0 0.0
  %1412 = vmatpush2.msra.mxu0 %v81
  %1413 = vmatprep.subr.mxu0 0.0
  %1414 = vmatpush2.msra.mxu0 %v80
  %1415 = vmatprep.subr.mxu0 0.0
  %1416 = vmatpush2.msra.mxu0 %v79
  %1417 = vmatprep.subr.mxu0 0.0
  %1418 = vmatpush2.msra.mxu0 %v78
  %1419 = vmatprep.subr.mxu0 0.0
  %1420 = vmatpush2.msra.mxu0 %v77
  %1421 = vmatprep.subr.mxu0 0.0
  %1422 = vmatpush2.msra.mxu0 %v76
  %1423 = vmatprep.subr.mxu0 0.0
  %1424 = vmatpush2.msra.mxu0 %v75
  %1425 = vmatprep.subr.mxu0 0.0
  %1426 = vmatpush2.msra.mxu0 %v74
  %1427 = vmatprep.subr.mxu0 0.0
  %1428 = vmatpush2.msra.mxu0 %v73
  %1429 = vmatprep.subr.mxu0 0.0
  %1430 = vmatpush2.msra.mxu0 %v72
  %1431 = vmatprep.subr.mxu0 0.0
  %1432 = vmatpush2.msra.mxu0 %v71
  %1433 = vmatprep.subr.mxu0 0.0
  %1434 = vmatpush2.msra.mxu0 %v70
  %1435 = vmatprep.subr.mxu0 0.0
  %1436 = vmatpush2.msra.mxu0 %v69
  %1437 = vmatprep.subr.mxu0 0.0
  %1438 = vmatpush2.msra.mxu0 %v68
  %1439 = vmatprep.subr.mxu0 0.0
  %1440 = vmatpush2.msra.mxu0 %v67
  %1441 = vmatprep.subr.mxu0 0.0
  %1442 = vmatpush2.msra.mxu0 %v66
  %1443 = vmatprep.mubr.f32.mxu0 %v1378
  %1444 = vmatmul.mubr.f32.gmra.mxu0 %v1369
  %v1445 = vpop.f32.mrf.mxu0
  %v1446 = vadd.f32 0.0, %v1445
  %v1447 = vpop.f32.mrf.mxu0
  %1448 = vdwg.mxu0
  %v1449 = vmul.f32 %v33, %v33
  %v1450 = vmul.f32 %v34, %v34
  %v1451 = vmul.f32 %v35, %v35
  %v1452 = vmul.f32 %v36, %v36
  %v1453 = vmul.f32 %v37, %v37
  %v1454 = vmul.f32 %v38, %v38
  %v1455 = vmul.f32 %v39, %v39
  %v1456 = vmul.f32 %v40, %v40
  %v1457 = vadd.f32 %v1449, %v1451
  %v1458 = vadd.f32 %v1457, %v1453
  %v1459 = vadd.f32 %v1458, %v1455
  %v1460 = vrot.slane %v1459, 4
  %v1461 = vadd.f32 %v1459, %v1460
  %v1462 = vrot.slane %v1461, 2
  %v1463 = vadd.f32 %v1461, %v1462
  %v1464 = vrot.slane %v1463, 1
  %v1465 = vadd.f32 %v1463, %v1464
  %v1466 = vadd.f32 %v1450, %v1452
  %v1467 = vadd.f32 %v1466, %v1454
  %v1468 = vadd.f32 %v1467, %v1456
  %v1469 = vrot.slane %v1468, 4
  %v1470 = vadd.f32 %v1468, %v1469
  %v1471 = vrot.slane %v1470, 2
  %v1472 = vadd.f32 %v1470, %v1471
  %v1473 = vrot.slane %v1472, 1
  %v1474 = vadd.f32 %v1472, %v1473
  %1475 = vmatprep.subr.mxu0 0.0
  %1476 = vmatpush1.msra.mxu0 %v65
  %1477 = vmatprep.subr.mxu0 0.0
  %1478 = vmatpush1.msra.mxu0 %v64
  %1479 = vmatprep.subr.mxu0 0.0
  %1480 = vmatpush1.msra.mxu0 %v63
  %1481 = vmatprep.subr.mxu0 0.0
  %1482 = vmatpush1.msra.mxu0 %v62
  %1483 = vmatprep.subr.mxu0 0.0
  %1484 = vmatpush1.msra.mxu0 %v61
  %1485 = vmatprep.subr.mxu0 0.0
  %1486 = vmatpush1.msra.mxu0 %v60
  %1487 = vmatprep.subr.mxu0 0.0
  %1488 = vmatpush1.msra.mxu0 %v59
  %1489 = vmatprep.subr.mxu0 0.0
  %1490 = vmatpush1.msra.mxu0 %v58
  %1491 = vmatprep.subr.mxu0 0.0
  %1492 = vmatpush1.msra.mxu0 %v57
  %1493 = vmatprep.subr.mxu0 0.0
  %1494 = vmatpush1.msra.mxu0 %v56
  %1495 = vmatprep.subr.mxu0 0.0
  %1496 = vmatpush1.msra.mxu0 %v55
  %1497 = vmatprep.subr.mxu0 0.0
  %1498 = vmatpush1.msra.mxu0 %v54
  %1499 = vmatprep.subr.mxu0 0.0
  %1500 = vmatpush1.msra.mxu0 %v53
  %1501 = vmatprep.subr.mxu0 0.0
  %1502 = vmatpush1.msra.mxu0 %v52
  %1503 = vmatprep.subr.mxu0 0.0
  %1504 = vmatpush1.msra.mxu0 %v51
  %1505 = vmatprep.subr.mxu0 0.0
  %1506 = vmatpush1.msra.mxu0 %v50
  %1507 = vmatprep.subr.mxu0 0.0
  %1508 = vmatpush2.msra.mxu0 %v81
  %1509 = vmatprep.subr.mxu0 0.0
  %1510 = vmatpush2.msra.mxu0 %v80
  %1511 = vmatprep.subr.mxu0 0.0
  %1512 = vmatpush2.msra.mxu0 %v79
  %1513 = vmatprep.subr.mxu0 0.0
  %1514 = vmatpush2.msra.mxu0 %v78
  %1515 = vmatprep.subr.mxu0 0.0
  %1516 = vmatpush2.msra.mxu0 %v77
  %1517 = vmatprep.subr.mxu0 0.0
  %1518 = vmatpush2.msra.mxu0 %v76
  %1519 = vmatprep.subr.mxu0 0.0
  %1520 = vmatpush2.msra.mxu0 %v75
  %1521 = vmatprep.subr.mxu0 0.0
  %1522 = vmatpush2.msra.mxu0 %v74
  %1523 = vmatprep.subr.mxu0 0.0
  %1524 = vmatpush2.msra.mxu0 %v73
  %1525 = vmatprep.subr.mxu0 0.0
  %1526 = vmatpush2.msra.mxu0 %v72
  %1527 = vmatprep.subr.mxu0 0.0
  %1528 = vmatpush2.msra.mxu0 %v71
  %1529 = vmatprep.subr.mxu0 0.0
  %1530 = vmatpush2.msra.mxu0 %v70
  %1531 = vmatprep.subr.mxu0 0.0
  %1532 = vmatpush2.msra.mxu0 %v69
  %1533 = vmatprep.subr.mxu0 0.0
  %1534 = vmatpush2.msra.mxu0 %v68
  %1535 = vmatprep.subr.mxu0 0.0
  %1536 = vmatpush2.msra.mxu0 %v67
  %1537 = vmatprep.subr.mxu0 0.0
  %1538 = vmatpush2.msra.mxu0 %v66
  %1539 = vmatprep.mubr.f32.mxu0 %v1474
  %1540 = vmatmul.mubr.f32.gmra.mxu0 %v1465
  %v1541 = vpop.f32.mrf.mxu0
  %v1542 = vadd.f32 0.0, %v1541
  %v1543 = vpop.f32.mrf.mxu0
  %1544 = vdwg.mxu0
  %v1545 = vmul.f32 %v1446, 0.001953125
  %v1546 = vmul.f32 %v1542, 0.001953125
  %v1547 = vmul.f32 %v1545, %v1545
  %v1548 = vsub.f32 %v1546, %v1547
  %v1549 = vmax.f32 %v1548, 0.0
  %v1550 = vadd.f32 %v1360, 1e-05
  %v1551 = vrsqrt.pop %v1550
  %v1552 = vmul.f32 %v1551, 0.35355338
  %v1553 = vadd.f32 %v1549, 1e-05
  %v1554 = vrsqrt.pop %v1553
  %v1555 = vmul.f32 %v1554, 0.35355338
  %v1556 = vrcp.pop %v1552
  %v1557 = vmul.f32 %v1555, %v1556
  %v1558 = vmul.f32 0.5, %v1556
  %v1559 = vadd.f32 %v1558, %v1356
  %v1560 = vmul.f32 %v1557, %v1545
  %v1561 = vadd.f32 %v1559, %v1560
  %vm1562 = vcmask 130048
  %v1564 = vsel %vm1562, %v1557, 0
  %1566 = vmatprep.subr.mxu0 0.0
  %1567 = vmatpush1.msra.mxu0 0.0
  %1568 = vmatprep.subr.mxu0 0.0
  %1569 = vmatpush1.msra.mxu0 0.0
  %1570 = vmatprep.subr.mxu0 0.0
  %1571 = vmatpush1.msra.mxu0 0.0
  %1572 = vmatprep.subr.mxu0 0.0
  %1573 = vmatpush1.msra.mxu0 0.0
  %1574 = vmatprep.subr.mxu0 0.0
  %1575 = vmatpush1.msra.mxu0 0.0
  %1576 = vmatprep.subr.mxu0 0.0
  %1577 = vmatpush1.msra.mxu0 0.0
  %1578 = vmatprep.subr.mxu0 0.0
  %1579 = vmatpush1.msra.mxu0 0.0
  %1580 = vmatprep.subr.mxu0 0.0
  %1581 = vmatpush1.msra.mxu0 0.0
  %1582 = vmatprep.subr.mxu0 0.0
  %1583 = vmatpush1.msra.mxu0 0.0
  %1584 = vmatprep.subr.mxu0 0.0
  %1585 = vmatpush1.msra.mxu0 0.0
  %1586 = vmatprep.subr.mxu0 0.0
  %1587 = vmatpush1.msra.mxu0 0.0
  %1588 = vmatprep.subr.mxu0 0.0
  %1589 = vmatpush1.msra.mxu0 0.0
  %1590 = vmatprep.subr.mxu0 0.0
  %1591 = vmatpush1.msra.mxu0 0.0
  %1592 = vmatprep.subr.mxu0 0.0
  %1593 = vmatpush1.msra.mxu0 0.0
  %1594 = vmatprep.subr.mxu0 %v85
  %1595 = vmatpush1.msra.mxu0 %v84
  %1596 = vmatprep.subr.mxu0 %v83
  %1597 = vmatpush1.msra.mxu0 %v82
  %1598 = vmatprep.subr.mxu0 0.0
  %1599 = vmatpush2.msra.mxu0 0.0
  %1600 = vmatprep.subr.mxu0 0.0
  %1601 = vmatpush2.msra.mxu0 0.0
  %1602 = vmatprep.subr.mxu0 0.0
  %1603 = vmatpush2.msra.mxu0 0.0
  %1604 = vmatprep.subr.mxu0 0.0
  %1605 = vmatpush2.msra.mxu0 0.0
  %1606 = vmatprep.subr.mxu0 0.0
  %1607 = vmatpush2.msra.mxu0 0.0
  %1608 = vmatprep.subr.mxu0 0.0
  %1609 = vmatpush2.msra.mxu0 0.0
  %1610 = vmatprep.subr.mxu0 0.0
  %1611 = vmatpush2.msra.mxu0 0.0
  %1612 = vmatprep.subr.mxu0 0.0
  %1613 = vmatpush2.msra.mxu0 0.0
  %1614 = vmatprep.subr.mxu0 0.0
  %1615 = vmatpush2.msra.mxu0 0.0
  %1616 = vmatprep.subr.mxu0 0.0
  %1617 = vmatpush2.msra.mxu0 0.0
  %1618 = vmatprep.subr.mxu0 0.0
  %1619 = vmatpush2.msra.mxu0 0.0
  %1620 = vmatprep.subr.mxu0 0.0
  %1621 = vmatpush2.msra.mxu0 0.0
  %1622 = vmatprep.subr.mxu0 0.0
  %1623 = vmatpush2.msra.mxu0 0.0
  %1624 = vmatprep.subr.mxu0 0.0
  %1625 = vmatpush2.msra.mxu0 0.0
  %1626 = vmatprep.subr.mxu0 0.0
  %1627 = vmatpush2.msra.mxu0 0.0
  %1628 = vmatprep.subr.mxu0 0.0
  %1629 = vmatpush2.msra.mxu0 0.0
  %1630 = vmatprep.mubr.f32.mxu0 0.0
  %1631 = vmatmul.mubr.f32.gmra.mxu0 %v1564
  %v1632 = vpop.f32.mrf.mxu0
  %v1633 = vadd.f32 0.0, %v1632
  %v1634 = vpop.f32.mrf.mxu0
  %v1635 = vadd.f32 0.0, %v1634
  %1636 = vdwg.mxu0
  %v1638 = vsel %vm1562, %v1561, 0
  %1640 = vmatprep.subr.mxu0 0.0
  %1641 = vmatpush1.msra.mxu0 0.0
  %1642 = vmatprep.subr.mxu0 0.0
  %1643 = vmatpush1.msra.mxu0 0.0
  %1644 = vmatprep.subr.mxu0 0.0
  %1645 = vmatpush1.msra.mxu0 0.0
  %1646 = vmatprep.subr.mxu0 0.0
  %1647 = vmatpush1.msra.mxu0 0.0
  %1648 = vmatprep.subr.mxu0 0.0
  %1649 = vmatpush1.msra.mxu0 0.0
  %1650 = vmatprep.subr.mxu0 0.0
  %1651 = vmatpush1.msra.mxu0 0.0
  %1652 = vmatprep.subr.mxu0 0.0
  %1653 = vmatpush1.msra.mxu0 0.0
  %1654 = vmatprep.subr.mxu0 0.0
  %1655 = vmatpush1.msra.mxu0 0.0
  %1656 = vmatprep.subr.mxu0 0.0
  %1657 = vmatpush1.msra.mxu0 0.0
  %1658 = vmatprep.subr.mxu0 0.0
  %1659 = vmatpush1.msra.mxu0 0.0
  %1660 = vmatprep.subr.mxu0 0.0
  %1661 = vmatpush1.msra.mxu0 0.0
  %1662 = vmatprep.subr.mxu0 0.0
  %1663 = vmatpush1.msra.mxu0 0.0
  %1664 = vmatprep.subr.mxu0 0.0
  %1665 = vmatpush1.msra.mxu0 0.0
  %1666 = vmatprep.subr.mxu0 0.0
  %1667 = vmatpush1.msra.mxu0 0.0
  %1668 = vmatprep.subr.mxu0 %v85
  %1669 = vmatpush1.msra.mxu0 %v84
  %1670 = vmatprep.subr.mxu0 %v83
  %1671 = vmatpush1.msra.mxu0 %v82
  %1672 = vmatprep.subr.mxu0 0.0
  %1673 = vmatpush2.msra.mxu0 0.0
  %1674 = vmatprep.subr.mxu0 0.0
  %1675 = vmatpush2.msra.mxu0 0.0
  %1676 = vmatprep.subr.mxu0 0.0
  %1677 = vmatpush2.msra.mxu0 0.0
  %1678 = vmatprep.subr.mxu0 0.0
  %1679 = vmatpush2.msra.mxu0 0.0
  %1680 = vmatprep.subr.mxu0 0.0
  %1681 = vmatpush2.msra.mxu0 0.0
  %1682 = vmatprep.subr.mxu0 0.0
  %1683 = vmatpush2.msra.mxu0 0.0
  %1684 = vmatprep.subr.mxu0 0.0
  %1685 = vmatpush2.msra.mxu0 0.0
  %1686 = vmatprep.subr.mxu0 0.0
  %1687 = vmatpush2.msra.mxu0 0.0
  %1688 = vmatprep.subr.mxu0 0.0
  %1689 = vmatpush2.msra.mxu0 0.0
  %1690 = vmatprep.subr.mxu0 0.0
  %1691 = vmatpush2.msra.mxu0 0.0
  %1692 = vmatprep.subr.mxu0 0.0
  %1693 = vmatpush2.msra.mxu0 0.0
  %1694 = vmatprep.subr.mxu0 0.0
  %1695 = vmatpush2.msra.mxu0 0.0
  %1696 = vmatprep.subr.mxu0 0.0
  %1697 = vmatpush2.msra.mxu0 0.0
  %1698 = vmatprep.subr.mxu0 0.0
  %1699 = vmatpush2.msra.mxu0 0.0
  %1700 = vmatprep.subr.mxu0 0.0
  %1701 = vmatpush2.msra.mxu0 0.0
  %1702 = vmatprep.subr.mxu0 0.0
  %1703 = vmatpush2.msra.mxu0 0.0
  %1704 = vmatprep.mubr.f32.mxu0 0.0
  %1705 = vmatmul.mubr.f32.gmra.mxu0 %v1638
  %v1706 = vpop.f32.mrf.mxu0
  %v1707 = vadd.f32 0.0, %v1706
  %v1708 = vpop.f32.mrf.mxu0
  %v1709 = vadd.f32 0.0, %v1708
  %1710 = vdwg.mxu0
  %v1711 = vlaneseq
  %v1712 = vshrl.u32 %v1711, 7
  %v1713 = vsub.s32 0, %v1712
  %v1714 = vrot.slane %v1633, %v1713
  %v1715 = vlaneseq
  %v1716 = vshrl.u32 %v1715, 7
  %v1717 = vsub.s32 0, %v1716
  %v1718 = vrot.slane %v1635, %v1717
  %v1719 = vmul.f32 %v1714, %v33
  %v1720 = vmul.f32 %v1718, %v34
  %v1721 = vmul.f32 %v1714, %v35
  %v1722 = vmul.f32 %v1718, %v36
  %v1723 = vmul.f32 %v1714, %v37
  %v1724 = vmul.f32 %v1718, %v38
  %v1725 = vmul.f32 %v1714, %v39
  %v1726 = vmul.f32 %v1718, %v40
  %v1727 = vadd.f32 %v1154, %v1719
  %v1728 = vadd.f32 %v1156, %v1720
  %v1729 = vadd.f32 %v1158, %v1721
  %v1730 = vadd.f32 %v1160, %v1722
  %v1731 = vadd.f32 %v1164, %v1723
  %v1732 = vadd.f32 %v1166, %v1724
  %v1733 = vadd.f32 %v1168, %v1725
  %v1734 = vadd.f32 %v1170, %v1726
  %v1735 = vlaneseq
  %v1736 = vshrl.u32 %v1735, 7
  %v1737 = vsub.s32 0, %v1736
  %v1738 = vrot.slane %v1707, %v1737
  %v1739 = vlaneseq
  %v1740 = vshrl.u32 %v1739, 7
  %v1741 = vsub.s32 0, %v1740
  %v1742 = vrot.slane %v1709, %v1741
  %vm1743 = vcmp.ge.f32.partialorder %v1727, %v1738
  %vm1744 = vcmp.ge.f32.partialorder %v1728, %v1742
  %vm1745 = vcmp.ge.f32.partialorder %v1729, %v1738
  %vm1746 = vcmp.ge.f32.partialorder %v1730, %v1742
  %vm1747 = vcmp.ge.f32.partialorder %v1731, %v1738
  %vm1748 = vcmp.ge.f32.partialorder %v1732, %v1742
  %vm1749 = vcmp.ge.f32.partialorder %v1733, %v1738
  %vm1750 = vcmp.ge.f32.partialorder %v1734, %v1742
  %v1751 = vsel %vm1743, 1, 0
  %v1752 = vsel %vm1744, 1, 0
  %v1753 = vsel %vm1745, 1, 0
  %v1754 = vsel %vm1746, 1, 0
  %v1755 = vsel %vm1747, 1, 0
  %v1756 = vsel %vm1748, 1, 0
  %v1757 = vsel %vm1749, 1, 0
  %v1758 = vsel %vm1750, 1, 0
  %v1759 = vcvt.s32.f32 %v1751
  %v1760 = vcvt.s32.f32 %v1752
  %v1761 = vcvt.s32.f32 %v1753
  %v1762 = vcvt.s32.f32 %v1754
  %v1763 = vcvt.s32.f32 %v1755
  %v1764 = vcvt.s32.f32 %v1756
  %v1765 = vcvt.s32.f32 %v1757
  %v1766 = vcvt.s32.f32 %v1758
  %v1767 = vpack.c.bf16 %v1761, %v1759
  %v1768 = vpack.c.bf16 %v1762, %v1760
  %v1769 = vpack.c.bf16 %v1765, %v1763
  %v1770 = vpack.c.bf16 %v1766, %v1764
  %v1775 = vunpack.c.l.b16 %v1767
  %v1776 = vunpack.c.l.b16 %v1768
  %v1777 = vunpack.c.h.b16 %v1767
  %v1778 = vunpack.c.h.b16 %v1768
  %v1779 = vunpack.c.l.b16 %v1769
  %v1780 = vunpack.c.l.b16 %v1770
  %v1781 = vunpack.c.h.b16 %v1769
  %v1782 = vunpack.c.h.b16 %v1770
  %v1783 = vpack.c.b16 %v1776, %v1775
  %v1784 = vpack.c.b16 %v1778, %v1777
  %v1785 = vpack.c.b16 %v1780, %v1779
  %v1786 = vpack.c.b16 %v1782, %v1781
  %1791 = vst [vmem:[%s9] sm:$0xff] %v1783
  %1792 = vst [vmem:[%s9 + $0x8] sm:$0xff] %v1784
  %1793 = vst [vmem:[%s9 + $0x10] sm:$0xff] %v1785
  %1794 = vst [vmem:[%s9 + $0x18] sm:$0xff] %v1786
  // Predicated region
  $region38: #{forward.1} parent=0 // pred_check
    _
  $region39: #{forward.1} parent=0 // pred_check_branch
    %1796 = sbr.rel (0) target = $region41
  $region40: #{forward.1} parent=0 // pred_region
    _
  $region41: #{forward.1} parent=0 // pred_fallthru
    _
  // Predicated region
  $region42: #{forward.1} parent=0 // pred_check
    _
  $region43: #{forward.1} parent=0 // pred_check_branch
    %1798 = sbr.rel (0) target = $region45
  $region44: #{forward.1} parent=0 // pred_region
    _
  $region45: #{forward.1} parent=0 // pred_fallthru
    _

</llo_original>
